<compile_context>
chip_gen: v6e
topology: v6e:2x2x1
jax: 0.10.0
libtpu: 0.0.40
codegen_flags: <defaults>
</compile_context>

<pallas_src>
import functools

import jax
import jax.numpy as jnp
from jax import lax
from jax.experimental import pallas as pl
from jax.experimental.pallas import tpu as pltpu


def _bnn_fused_kernel(*refs, sigma, n_layers):
    """Fused BNN forward for one block of Monte-Carlo samples.

    refs layout:
      refs[0]                      x_ref     (Nb, Nin)             shared input
      refs[1 + 4*l + 0]            wmu_ref   (No_l, Ni_l)          weight means
      refs[1 + 4*l + 1]            eps_ref   (S_BLK, No_l, Ni_l)   weight noise
      refs[1 + 4*l + 2]            bmu_ref   (1, No_l)             bias means
      refs[1 + 4*l + 3]            beps_ref  (S_BLK, 1, No_l)      bias noise
      refs[-1]                     o_ref     (1, Nb, S_BLK)        output slab
    """
    x_ref, o_ref = refs[0], refs[-1]
    layer_refs = [refs[1 + 4 * l: 1 + 4 * (l + 1)] for l in range(n_layers)]

    x = x_ref[...]                                    # (Nb, Nin)
    nb, nin = x.shape
    s_blk = layer_refs[0][1].shape[0]                 # samples in this grid step

    # Replicate the shared input across the sample block inside VMEM only
    # (no (Ns, Nb, Nin) tensor is ever written to / read from HBM).
    h = jnp.broadcast_to(x[None, :, :], (s_blk, nb, nin))

    for l, (wmu_ref, eps_ref, bmu_ref, beps_ref) in enumerate(layer_refs):
        wmu = wmu_ref[...]                            # (No, Ni)  shared means
        eps = eps_ref[...]                            # (S_BLK, No, Ni) per-sample noise
        no, ni = wmu.shape
        bias = bmu_ref[...][None, :, :] + sigma * beps_ref[...]   # (S_BLK, 1, No)

        if l == n_layers - 1:
            # Final layer, No == 1.  A width-1 MXU matmul would waste the whole
            # systolic array and end in masked lane-width-1 stores; instead do a
            # VPU multiply + XLU lane-reduce and emit a lane-dense (Nb, S_BLK)
            # slab (samples on the 128-lane axis).
            w_s = wmu[0][None, :] + sigma * eps[:, 0, :]            # (S_BLK, Ni)
            y = jnp.sum(h * w_s[:, None, :], axis=-1)               # (S_BLK, Nb)
            y = y + bias[:, 0, :]                                   # + per-sample bias
            o_ref[0] = jnp.transpose(y).astype(o_ref.dtype)
        else:
            # ---- split GEMM: shared-mean term (one GEMM) + sigma * noise ----
            if l == 0:
                # x is identical across samples -> compute the mean term once.
                mean_t = lax.dot_general(
                    x, wmu, (((1,), (1,)), ((), ())),
                    preferred_element_type=jnp.float32)[None]        # (1, Nb, No)
            else:
                h2d = h.reshape(s_blk * nb, ni)
                mean_t = lax.dot_general(
                    h2d, wmu, (((1,), (1,)), ((), ())),
                    preferred_element_type=jnp.float32).reshape(s_blk, nb, no)

            # Per-sample batched GEMM against the noise (batch dim = sample).
            noise_t = jnp.einsum('sni,soi->sno', h, eps,
                                 preferred_element_type=jnp.float32)  # (S_BLK, Nb, No)

            # Hidden layers carry a ReLU.
            h = jnp.maximum(mean_t + sigma * noise_t + bias, 0.0)


def _pick_sample_block(n_samples, params, n_batch,
                       vmem_budget_bytes=16 * 1024 * 1024):
    """Largest divisor of n_samples whose per-step working set fits the VMEM
    budget; prefer >= 2 grid steps so both TensorCores get work."""
    bytes_per_sample = 0
    max_feat = params[0][0].shape[1]
    for w_mu, _ in params:
        no, ni = w_mu.shape
        bytes_per_sample += 4 * (no * ni + no)          # eps + beps (f32)
        max_feat = max(max_feat, no, ni)
    bytes_per_sample += 4 * 2 * n_batch * max_feat      # ping/pong activations
    bytes_per_sample *= 2                               # double-buffered pipeline
    cap = max(1, vmem_budget_bytes // max(bytes_per_sample, 1))

    divisors = [d for d in range(1, n_samples + 1) if n_samples % d == 0]
    fitting = [d for d in divisors if d <= cap]
    blk = fitting[-1] if fitting else 1
    if blk == n_samples and n_samples % 2 == 0 and n_samples >= 4:
        blk = n_samples // 2                            # give the grid >= 2 steps
    return blk


def bnn_forward(x, params, noises, sigma, *, sample_block=None):
    """Fused Pallas forward: x (Nb, Nin) -> y (Nb, Ns, 1)."""
    n_batch, n_in = x.shape
    n_samples = noises[0][0].shape[0]
    n_layers = len(params)
    n_out = params[-1][0].shape[0]
    if n_out != 1:
        raise NotImplementedError('N_out != 1 not yet implemented.')

    if sample_block is None:
        sample_block = _pick_sample_block(n_samples, params, n_batch)
    assert n_samples % sample_block == 0
    n_blk = n_samples // sample_block

    inputs = [x]
    in_specs = [pl.BlockSpec((n_batch, n_in), lambda s: (0, 0))]
    for (w_mu, b_mu), (eps, beps) in zip(params, noises):
        no, ni = w_mu.shape
        inputs += [w_mu, eps, b_mu.reshape(1, no), beps.reshape(n_samples, 1, no)]
        in_specs += [
            pl.BlockSpec((no, ni), lambda s: (0, 0)),                   # shared means
            pl.BlockSpec((sample_block, no, ni), lambda s: (s, 0, 0)),  # per-sample eps
            pl.BlockSpec((1, no), lambda s: (0, 0)),                    # shared bias mean
            pl.BlockSpec((sample_block, 1, no), lambda s: (s, 0, 0)),   # per-sample beps
        ]

    kernel = functools.partial(_bnn_fused_kernel, sigma=float(sigma),
                               n_layers=n_layers)
    out = pl.pallas_call(
        kernel,
        out_shape=jax.ShapeDtypeStruct((n_blk, n_batch, sample_block), jnp.float32),
        grid=(n_blk,),
        in_specs=in_specs,
        out_specs=pl.BlockSpec((1, n_batch, sample_block), lambda s: (s, 0, 0)),
        compiler_params=pltpu.CompilerParams(
            dimension_semantics=("parallel",),
            vmem_limit_bytes=32 * 1024 * 1024,
        ),
    )(*inputs)

    # (n_blk, Nb, S_BLK) -> (Nb, Ns, 1): sample index = blk * S_BLK + lane
    y = jnp.transpose(out, (1, 0, 2)).reshape(n_batch, n_samples)
    return y[:, :, None]


def init_bnn_params(key, N_in, N_out, N_hidden, N_units, mumax_initial=1.0):
    """Deterministic init matching BLinear: mu ~ U(-mumax, mumax)."""
    dims = [N_in] + [N_units] * N_hidden + [N_out]
    params = []
    for i in range(len(dims) - 1):
        key, k1, k2 = jax.random.split(key, 3)
        w_mu = jax.random.uniform(k1, (dims[i + 1], dims[i]), jnp.float32,
                                  minval=-mumax_initial, maxval=mumax_initial)
        b_mu = jax.random.uniform(k2, (dims[i + 1],), jnp.float32,
                                  minval=-mumax_initial, maxval=mumax_initial)
        params.append((w_mu, b_mu))
    return params


def sample_noise(key, params, N_samples):
    """Per-sample standard-normal noise for every BLinear layer."""
    noises = []
    for w_mu, b_mu in params:
        key, k1, k2 = jax.random.split(key, 3)
        eps = jax.random.normal(k1, (N_samples,) + w_mu.shape, jnp.float32)
        beps = jax.random.normal(k2, (N_samples,) + b_mu.shape, jnp.float32)
        noises.append((eps, beps))
    return noises


def bnn_reference(x, params, noises, sigma):
    """Pure-JAX reference of the same forward pass."""
    Nb, Nin = x.shape
    Ns = noises[0][0].shape[0]
    y = jnp.broadcast_to(x[:, None, :], (Nb, Ns, Nin))
    n_layers = len(params)
    for li, ((w_mu, b_mu), (eps, beps)) in enumerate(zip(params, noises)):
        W = w_mu[None] + sigma * eps          # (Ns, Nout, Nin)
        B = b_mu[None] + sigma * beps         # (Ns, Nout)
        y = jnp.einsum('bsi,soi->bso', y, W) + B[None]
        if li < n_layers - 1:
            y = jax.nn.relu(y)
    return y


if __name__ == "__main__":
    # Small shapes consistent with the module: x is (N_batch, N_in), N_out = 1.
    N_in, N_out, N_hidden, N_units = 16, 1, 2, 32
    N_batch, N_samples = 4, 16
    sigma_initial, mumax_initial = 0.1, 1.0

    key = jax.random.PRNGKey(0)
    k_params, k_x, k_noise = jax.random.split(key, 3)

    params = init_bnn_params(k_params, N_in, N_out, N_hidden, N_units,
                             mumax_initial)
    x = jax.random.normal(k_x, (N_batch, N_in), jnp.float32)
    noises = sample_noise(k_noise, params, N_samples)

    y = bnn_forward(x, params, noises, sigma_initial)
    y = jax.block_until_ready(y)

    assert y.shape == (N_batch, N_samples, N_out), y.shape
    y_ref = bnn_reference(x, params, noises, sigma_initial)
    assert jnp.allclose(y, y_ref, atol=1e-4, rtol=1e-3), \
        f"max abs err {jnp.max(jnp.abs(y - y_ref))}"

    print("KERNEL_OK")
</pallas_src>

<mosaic_0001>
module attributes {stable_mosaic.version = 11 : i64} {
  func.func @_bnn_fused_kernel(%arg0: i32, %arg1: memref<4x16xf32, #tpu.memory_space<vmem>>, %arg2: memref<32x16xf32, #tpu.memory_space<vmem>>, %arg3: memref<8x32x16xf32, #tpu.memory_space<vmem>>, %arg4: memref<1x32xf32, #tpu.memory_space<vmem>>, %arg5: memref<8x1x32xf32, #tpu.memory_space<vmem>>, %arg6: memref<32x32xf32, #tpu.memory_space<vmem>>, %arg7: memref<8x32x32xf32, #tpu.memory_space<vmem>>, %arg8: memref<1x32xf32, #tpu.memory_space<vmem>>, %arg9: memref<8x1x32xf32, #tpu.memory_space<vmem>>, %arg10: memref<1x32xf32, #tpu.memory_space<vmem>>, %arg11: memref<8x1x32xf32, #tpu.memory_space<vmem>>, %arg12: memref<1x1xf32, #tpu.memory_space<vmem>>, %arg13: memref<8x1x1xf32, #tpu.memory_space<vmem>>, %arg14: memref<1x4x8xf32, #tpu.memory_space<vmem>>) attributes {dimension_semantics = [#tpu.dimension_semantics<parallel>], iteration_bounds = array<i64: 2>, scalar_prefetch = 0 : i64, scratch_operands = 0 : i64, tpu.core_type = #tpu.core_type<tc>, window_params = [{pipeline_mode = #tpu.pipeline_mode<synchronous>, transform_indices = @transform_0, window_bounds = array<i64: 4, 16>}, {pipeline_mode = #tpu.pipeline_mode<synchronous>, transform_indices = @transform_1, window_bounds = array<i64: 32, 16>}, {transform_indices = @transform_2, window_bounds = array<i64: 8, 32, 16>}, {pipeline_mode = #tpu.pipeline_mode<synchronous>, transform_indices = @transform_3, window_bounds = array<i64: 1, 32>}, {transform_indices = @transform_4, window_bounds = array<i64: 8, 1, 32>}, {pipeline_mode = #tpu.pipeline_mode<synchronous>, transform_indices = @transform_5, window_bounds = array<i64: 32, 32>}, {transform_indices = @transform_6, window_bounds = array<i64: 8, 32, 32>}, {pipeline_mode = #tpu.pipeline_mode<synchronous>, transform_indices = @transform_7, window_bounds = array<i64: 1, 32>}, {transform_indices = @transform_8, window_bounds = array<i64: 8, 1, 32>}, {pipeline_mode = #tpu.pipeline_mode<synchronous>, transform_indices = @transform_9, window_bounds = array<i64: 1, 32>}, {transform_indices = @transform_10, window_bounds = array<i64: 8, 1, 32>}, {pipeline_mode = #tpu.pipeline_mode<synchronous>, transform_indices = @transform_11, window_bounds = array<i64: 1, 1>}, {transform_indices = @transform_12, window_bounds = array<i64: 8, 1, 1>}, {transform_indices = @transform_13, window_bounds = array<i64: 1, 4, 8>}]} {
    %c0 = arith.constant 0 : index
    %c0_0 = arith.constant 0 : index
    %0 = vector.load %arg1[%c0, %c0_0] : memref<4x16xf32, #tpu.memory_space<vmem>>, vector<4x16xf32>
    %1 = vector.shape_cast %0 : vector<4x16xf32> to vector<1x4x16xf32>
    %2 = vector.shape_cast %1 : vector<1x4x16xf32> to vector<1x4x16xf32>
    %3 = vector.broadcast %2 : vector<1x4x16xf32> to vector<8x4x16xf32>
    %c0_1 = arith.constant 0 : index
    %c0_2 = arith.constant 0 : index
    %4 = vector.load %arg2[%c0_1, %c0_2] : memref<32x16xf32, #tpu.memory_space<vmem>>, vector<32x16xf32>
    %c0_3 = arith.constant 0 : index
    %c0_4 = arith.constant 0 : index
    %c0_5 = arith.constant 0 : index
    %5 = vector.load %arg3[%c0_3, %c0_4, %c0_5] : memref<8x32x16xf32, #tpu.memory_space<vmem>>, vector<8x32x16xf32>
    %c0_6 = arith.constant 0 : index
    %c0_7 = arith.constant 0 : index
    %6 = vector.load %arg4[%c0_6, %c0_7] : memref<1x32xf32, #tpu.memory_space<vmem>>, vector<1x32xf32>
    %7 = vector.shape_cast %6 : vector<1x32xf32> to vector<1x1x32xf32>
    %c0_8 = arith.constant 0 : index
    %c0_9 = arith.constant 0 : index
    %c0_10 = arith.constant 0 : index
    %8 = vector.load %arg5[%c0_8, %c0_9, %c0_10] : memref<8x1x32xf32, #tpu.memory_space<vmem>>, vector<8x1x32xf32>
    %cst = arith.constant 1.000000e-01 : f32
    %9 = vector.broadcast %cst : f32 to vector<8x1x32xf32>
    %10 = arith.mulf %9, %8 : vector<8x1x32xf32>
    %11 = vector.broadcast %7 : vector<1x1x32xf32> to vector<8x1x32xf32>
    %12 = arith.addf %11, %10 : vector<8x1x32xf32>
    %cst_11 = arith.constant dense<0.000000e+00> : vector<4x32xf32>
    %13 = tpu.matmul %0, %4, %cst_11 {dimension_numbers = #tpu.dot_dimension_numbers<[1], [1], [0], [0], [0, 0, 1, 0], [], []>} : vector<4x16xf32>, vector<32x16xf32>, vector<4x32xf32> -> vector<4x32xf32>
    %14 = vector.shape_cast %13 : vector<4x32xf32> to vector<1x4x32xf32>
    "tpu.trace_start"() <{level = 10 : i32, message = "sni,soi->sno"}> : () -> ()
    %cst_12 = arith.constant dense<0.000000e+00> : vector<8x4x32xf32>
    %15 = tpu.matmul %3, %5, %cst_12 {dimension_numbers = #tpu.dot_dimension_numbers<[2], [2], [1], [1], [0, 0, 0, 1, 1, 1], [0], [0]>} : vector<8x4x16xf32>, vector<8x32x16xf32>, vector<8x4x32xf32> -> vector<8x4x32xf32>
    "tpu.trace_stop"() : () -> ()
    %cst_13 = arith.constant 1.000000e-01 : f32
    %16 = vector.broadcast %cst_13 : f32 to vector<8x4x32xf32>
    %17 = arith.mulf %16, %15 : vector<8x4x32xf32>
    %18 = vector.broadcast %14 : vector<1x4x32xf32> to vector<8x4x32xf32>
    %19 = arith.addf %18, %17 : vector<8x4x32xf32>
    %20 = vector.broadcast %12 : vector<8x1x32xf32> to vector<8x4x32xf32>
    %21 = arith.addf %19, %20 : vector<8x4x32xf32>
    %cst_14 = arith.constant 0.000000e+00 : f32
    %22 = vector.broadcast %cst_14 : f32 to vector<8x4x32xf32>
    %23 = arith.maximumf %21, %22 : vector<8x4x32xf32>
    %c0_15 = arith.constant 0 : index
    %c0_16 = arith.constant 0 : index
    %24 = vector.load %arg6[%c0_15, %c0_16] : memref<32x32xf32, #tpu.memory_space<vmem>>, vector<32x32xf32>
    %c0_17 = arith.constant 0 : index
    %c0_18 = arith.constant 0 : index
    %c0_19 = arith.constant 0 : index
    %25 = vector.load %arg7[%c0_17, %c0_18, %c0_19] : memref<8x32x32xf32, #tpu.memory_space<vmem>>, vector<8x32x32xf32>
    %c0_20 = arith.constant 0 : index
    %c0_21 = arith.constant 0 : index
    %26 = vector.load %arg8[%c0_20, %c0_21] : memref<1x32xf32, #tpu.memory_space<vmem>>, vector<1x32xf32>
    %27 = vector.shape_cast %26 : vector<1x32xf32> to vector<1x1x32xf32>
    %c0_22 = arith.constant 0 : index
    %c0_23 = arith.constant 0 : index
    %c0_24 = arith.constant 0 : index
    %28 = vector.load %arg9[%c0_22, %c0_23, %c0_24] : memref<8x1x32xf32, #tpu.memory_space<vmem>>, vector<8x1x32xf32>
    %cst_25 = arith.constant 1.000000e-01 : f32
    %29 = vector.broadcast %cst_25 : f32 to vector<8x1x32xf32>
    %30 = arith.mulf %29, %28 : vector<8x1x32xf32>
    %31 = vector.broadcast %27 : vector<1x1x32xf32> to vector<8x1x32xf32>
    %32 = arith.addf %31, %30 : vector<8x1x32xf32>
    %33 = vector.shape_cast %23 : vector<8x4x32xf32> to vector<32x32xf32>
    %cst_26 = arith.constant dense<0.000000e+00> : vector<32x32xf32>
    %34 = tpu.matmul %33, %24, %cst_26 {dimension_numbers = #tpu.dot_dimension_numbers<[1], [1], [0], [0], [0, 0, 1, 0], [], []>} : vector<32x32xf32>, vector<32x32xf32>, vector<32x32xf32> -> vector<32x32xf32>
    %35 = vector.shape_cast %34 : vector<32x32xf32> to vector<8x4x32xf32>
    "tpu.trace_start"() <{level = 10 : i32, message = "sni,soi->sno"}> : () -> ()
    %cst_27 = arith.constant dense<0.000000e+00> : vector<8x4x32xf32>
    %36 = tpu.matmul %23, %25, %cst_27 {dimension_numbers = #tpu.dot_dimension_numbers<[2], [2], [1], [1], [0, 0, 0, 1, 1, 1], [0], [0]>} : vector<8x4x32xf32>, vector<8x32x32xf32>, vector<8x4x32xf32> -> vector<8x4x32xf32>
    "tpu.trace_stop"() : () -> ()
    %cst_28 = arith.constant 1.000000e-01 : f32
    %37 = vector.broadcast %cst_28 : f32 to vector<8x4x32xf32>
    %38 = arith.mulf %37, %36 : vector<8x4x32xf32>
    %39 = arith.addf %35, %38 : vector<8x4x32xf32>
    %40 = vector.broadcast %32 : vector<8x1x32xf32> to vector<8x4x32xf32>
    %41 = arith.addf %39, %40 : vector<8x4x32xf32>
    %cst_29 = arith.constant 0.000000e+00 : f32
    %42 = vector.broadcast %cst_29 : f32 to vector<8x4x32xf32>
    %43 = arith.maximumf %41, %42 : vector<8x4x32xf32>
    %c0_30 = arith.constant 0 : index
    %c0_31 = arith.constant 0 : index
    %44 = vector.load %arg10[%c0_30, %c0_31] : memref<1x32xf32, #tpu.memory_space<vmem>>, vector<1x32xf32>
    %c0_32 = arith.constant 0 : index
    %c0_33 = arith.constant 0 : index
    %c0_34 = arith.constant 0 : index
    %45 = vector.load %arg11[%c0_32, %c0_33, %c0_34] : memref<8x1x32xf32, #tpu.memory_space<vmem>>, vector<8x1x32xf32>
    %c0_35 = arith.constant 0 : index
    %c0_36 = arith.constant 0 : index
    %46 = vector.load %arg12[%c0_35, %c0_36] : memref<1x1xf32, #tpu.memory_space<vmem>>, vector<1x1xf32>
    %47 = vector.shape_cast %46 : vector<1x1xf32> to vector<1x1x1xf32>
    %c0_37 = arith.constant 0 : index
    %c0_38 = arith.constant 0 : index
    %c0_39 = arith.constant 0 : index
    %48 = vector.load %arg13[%c0_37, %c0_38, %c0_39] : memref<8x1x1xf32, #tpu.memory_space<vmem>>, vector<8x1x1xf32>
    %cst_40 = arith.constant 1.000000e-01 : f32
    %49 = vector.broadcast %cst_40 : f32 to vector<8x1x1xf32>
    %50 = arith.mulf %49, %48 : vector<8x1x1xf32>
    %51 = vector.broadcast %47 : vector<1x1x1xf32> to vector<8x1x1xf32>
    %52 = arith.addf %51, %50 : vector<8x1x1xf32>
    %53 = vector.shape_cast %44 : vector<1x32xf32> to vector<32xf32>
    %54 = vector.shape_cast %53 : vector<32xf32> to vector<1x32xf32>
    %55 = vector.shape_cast %45 : vector<8x1x32xf32> to vector<8x32xf32>
    %cst_41 = arith.constant 1.000000e-01 : f32
    %56 = vector.broadcast %cst_41 : f32 to vector<8x32xf32>
    %57 = arith.mulf %56, %55 : vector<8x32xf32>
    %58 = vector.broadcast %54 : vector<1x32xf32> to vector<8x32xf32>
    %59 = arith.addf %58, %57 : vector<8x32xf32>
    %60 = vector.shape_cast %59 : vector<8x32xf32> to vector<8x1x32xf32>
    %61 = vector.broadcast %60 : vector<8x1x32xf32> to vector<8x4x32xf32>
    %62 = arith.mulf %43, %61 : vector<8x4x32xf32>
    %cst_42 = arith.constant dense<0.000000e+00> : vector<8x4xf32>
    %63 = vector.multi_reduction <add>, %62, %cst_42 [2] : vector<8x4x32xf32> to vector<8x4xf32>
    %64 = vector.shape_cast %52 : vector<8x1x1xf32> to vector<8x1xf32>
    %65 = vector.broadcast %64 : vector<8x1xf32> to vector<8x4xf32>
    %66 = arith.addf %63, %65 : vector<8x4xf32>
    %67 = tpu.transpose %66, [1, 0] : vector<8x4xf32> -> vector<4x8xf32>
    %c0_43 = arith.constant 0 : index
    %c0_44 = arith.constant 0 : index
    %c0_45 = arith.constant 0 : index
    %68 = vector.load %arg14[%c0_43, %c0_44, %c0_45] : memref<1x4x8xf32, #tpu.memory_space<vmem>>, vector<1x4x8xf32>
    %69 = vector.shape_cast %68 : vector<1x4x8xf32> to vector<4x8xf32>
    %70 = vector.shape_cast %67 : vector<4x8xf32> to vector<1x4x8xf32>
    tpu.vector_store %arg14[%c0_43, %c0_44, %c0_45], %70 {strides = array<i32>} : memref<1x4x8xf32, #tpu.memory_space<vmem>>, vector<1x4x8xf32>,
    return
  }
  func.func @transform_0(%arg0: i32) -> (i32, i32) {
    %c0_i32 = arith.constant 0 : i32
    %c0_i32_0 = arith.constant 0 : i32
    %c0_i32_1 = arith.constant 0 : i32
    return %c0_i32, %c0_i32_0 : i32, i32
  }
  func.func @transform_1(%arg0: i32) -> (i32, i32) {
    %c0_i32 = arith.constant 0 : i32
    %c0_i32_0 = arith.constant 0 : i32
    %c0_i32_1 = arith.constant 0 : i32
    return %c0_i32, %c0_i32_0 : i32, i32
  }
  func.func @transform_2(%arg0: i32) -> (i32, i32, i32) {
    %c0_i32 = arith.constant 0 : i32
    %c0_i32_0 = arith.constant 0 : i32
    %c0_i32_1 = arith.constant 0 : i32
    return %arg0, %c0_i32, %c0_i32_0 : i32, i32, i32
  }
  func.func @transform_3(%arg0: i32) -> (i32, i32) {
    %c0_i32 = arith.constant 0 : i32
    %c0_i32_0 = arith.constant 0 : i32
    %c0_i32_1 = arith.constant 0 : i32
    return %c0_i32, %c0_i32_0 : i32, i32
  }
  func.func @transform_4(%arg0: i32) -> (i32, i32, i32) {
    %c0_i32 = arith.constant 0 : i32
    %c0_i32_0 = arith.constant 0 : i32
    %c0_i32_1 = arith.constant 0 : i32
    return %arg0, %c0_i32, %c0_i32_0 : i32, i32, i32
  }
  func.func @transform_5(%arg0: i32) -> (i32, i32) {
    %c0_i32 = arith.constant 0 : i32
    %c0_i32_0 = arith.constant 0 : i32
    %c0_i32_1 = arith.constant 0 : i32
    return %c0_i32, %c0_i32_0 : i32, i32
  }
  func.func @transform_6(%arg0: i32) -> (i32, i32, i32) {
    %c0_i32 = arith.constant 0 : i32
    %c0_i32_0 = arith.constant 0 : i32
    %c0_i32_1 = arith.constant 0 : i32
    return %arg0, %c0_i32, %c0_i32_0 : i32, i32, i32
  }
  func.func @transform_7(%arg0: i32) -> (i32, i32) {
    %c0_i32 = arith.constant 0 : i32
    %c0_i32_0 = arith.constant 0 : i32
    %c0_i32_1 = arith.constant 0 : i32
    return %c0_i32, %c0_i32_0 : i32, i32
  }
  func.func @transform_8(%arg0: i32) -> (i32, i32, i32) {
    %c0_i32 = arith.constant 0 : i32
    %c0_i32_0 = arith.constant 0 : i32
    %c0_i32_1 = arith.constant 0 : i32
    return %arg0, %c0_i32, %c0_i32_0 : i32, i32, i32
  }
  func.func @transform_9(%arg0: i32) -> (i32, i32) {
    %c0_i32 = arith.constant 0 : i32
    %c0_i32_0 = arith.constant 0 : i32
    %c0_i32_1 = arith.constant 0 : i32
    return %c0_i32, %c0_i32_0 : i32, i32
  }
  func.func @transform_10(%arg0: i32) -> (i32, i32, i32) {
    %c0_i32 = arith.constant 0 : i32
    %c0_i32_0 = arith.constant 0 : i32
    %c0_i32_1 = arith.constant 0 : i32
    return %arg0, %c0_i32, %c0_i32_0 : i32, i32, i32
  }
  func.func @transform_11(%arg0: i32) -> (i32, i32) {
    %c0_i32 = arith.constant 0 : i32
    %c0_i32_0 = arith.constant 0 : i32
    %c0_i32_1 = arith.constant 0 : i32
    return %c0_i32, %c0_i32_0 : i32, i32
  }
  func.func @transform_12(%arg0: i32) -> (i32, i32, i32) {
    %c0_i32 = arith.constant 0 : i32
    %c0_i32_0 = arith.constant 0 : i32
    %c0_i32_1 = arith.constant 0 : i32
    return %arg0, %c0_i32, %c0_i32_0 : i32, i32, i32
  }
  func.func @transform_13(%arg0: i32) -> (i32, i32, i32) {
    %c0_i32 = arith.constant 0 : i32
    %c0_i32_0 = arith.constant 0 : i32
    %c0_i32_1 = arith.constant 0 : i32
    return %arg0, %c0_i32, %c0_i32_0 : i32, i32, i32
  }
}

</mosaic_0001>

<llo_original>
// kernel: tpu_custom_call.1
$region0: #{tpu_custom_call.1}
  #allocation0 [shape = 'u32[]', space=smem, size = 0x4, offset = 0x4, fixed_abs, tag = 'smem constant byte address 0x4 - core index']
  #allocation1 [shape = 'u32[144,128]{1,0:T(1,128)}', space=vmem, size = 0x12000, scoped, tag = 'internal scratch']
  #allocation2 [shape = 'f32[1,1]{1,0:T(1,128)S(1)}', space=vmem, size = 0x200, scoped, tag = 'scoped memory for tpu_custom_call.1']
  %s0 = inlined_call_operand.vmem [shape: f32[4,16], index: 0, kind: input, shape index: {}]
  %s1 = inlined_call_operand.vmem [shape: f32[32,16], index: 1, kind: input, shape index: {}]
  %s2 = inlined_call_operand.vmem [shape: f32[16,32,16], index: 2, kind: input, shape index: {}]
  %s3 = inlined_call_operand.vmem [shape: f32[1,32], index: 3, kind: input, shape index: {}]
  %s4 = inlined_call_operand.vmem [shape: f32[16,1,32], index: 4, kind: input, shape index: {}]
  %s5 = inlined_call_operand.vmem [shape: f32[32,32], index: 5, kind: input, shape index: {}]
  %s6 = inlined_call_operand.vmem [shape: f32[16,32,32], index: 6, kind: input, shape index: {}]
  %s7 = inlined_call_operand.vmem [shape: f32[1,32], index: 7, kind: input, shape index: {}]
  %s8 = inlined_call_operand.vmem [shape: f32[16,1,32], index: 8, kind: input, shape index: {}]
  %s9 = inlined_call_operand.vmem [shape: f32[1,32], index: 9, kind: input, shape index: {}]
  %s10 = inlined_call_operand.vmem [shape: f32[16,1,32], index: 10, kind: input, shape index: {}]
  %s11 = inlined_call_operand.<no memory space> [shape: f32[1,1], index: 11, kind: input, shape index: {}]
  %s12 = inlined_call_operand.vmem [shape: f32[16,1,1], index: 12, kind: input, shape index: {}]
  %s13 = inlined_call_operand.hbm [shape: f32[2,4,8], index: 13, kind: output, shape index: {}]
  %s14 = sld [smem:[#allocation0]]
  $region85: #{tpu_custom_call.1} parent=0
    _
  %s16 = ssub.s32 1, %s14
  %s17 = scalar_select 0, %s16, %s14
  %v18 = vstv %s11
  %19 = vst [vmem:[#allocation2] sm:$0x1] %v18
  $region1: #{tpu_custom_call.1} parent=0
    #allocation3 [shape = 'u8[4096]{0}', space=vmem, size = 0x1000, scoped, tag = 'output window, operand 0']
    #allocation4 [shape = 's32[2]{0}', space=sflag, size = 0x8, scoped, tag = 'scoped memory for tpu_custom_call.1']
    %20 = vsyncpa [#allocation4], 0
    %s21 = scalar_lea.sflag [#allocation4], 1
    %22 = vsyncpa %s21, 0
    loop: start=0, step=1, limit=4
    $region2: #{tpu_custom_call.1} parent=1 // loop_pre_header
      _
    $region3: #{tpu_custom_call.1} parent=1 // loop_header
      %s24 = sphi 0, %s28
      %p25 = scmp.ge.s32.totalorder %s24, 4
      %s32 = sphi 0, %s32
      %s34 = sphi 0, %s32
      %s35 = sphi 0, %s34
      %s49 = sphi 0, %s35
      %s53 = sphi 0, %s53
      %s55 = sphi 0, %s53
      %s56 = sphi 0, %s55
      %s70 = sphi 0, %s56
      %s76 = sphi 0, %s78
      %s79 = sphi 0, %s76
      %s80 = sphi 0, %s79
      %s96 = sphi 0, %s80
      %s100 = sphi 0, %s100
      %s102 = sphi 0, %s100
      %s103 = sphi 0, %s102
      %s117 = sphi 0, %s103
      %s123 = sphi 0, %s125
      %s126 = sphi 0, %s123
      %s127 = sphi 0, %s126
      %s143 = sphi 0, %s127
      %s147 = sphi 0, %s147
      %s149 = sphi 0, %s147
      %s150 = sphi 0, %s149
      %s164 = sphi 0, %s150
      %s170 = sphi 0, %s172
      %s173 = sphi 0, %s170
      %s174 = sphi 0, %s173
      %s190 = sphi 0, %s174
      %s194 = sphi 0, %s194
      %s196 = sphi 0, %s194
      %s197 = sphi 0, %s196
      %s211 = sphi 0, %s197
      %s217 = sphi 0, %s219
      %s220 = sphi 0, %s217
      %s221 = sphi 0, %s220
      %s237 = sphi 0, %s221
      %s241 = sphi 0, %s241
      %s243 = sphi 0, %s241
      %s244 = sphi 0, %s243
      %s258 = sphi 0, %s244
      %s264 = sphi 0, %s266
      %s267 = sphi 0, %s264
      %s268 = sphi 0, %s267
      %s284 = sphi 0, %s268
      %s288 = sphi 0, %s288
      %s290 = sphi 0, %s288
      %s291 = sphi 0, %s290
      %s305 = sphi 0, %s291
      %s311 = sphi 0, %s313
      %s314 = sphi 0, %s311
      %s315 = sphi 0, %s314
      %s331 = sphi 0, %s315
      %s337 = sphi 0, %s339
      %s340 = sphi 0, %s337
      %s341 = sphi 0, %s340
      %s357 = sphi 0, %s341
    $region4: #{tpu_custom_call.1} parent=1 // loop_header_branch
      %27 = sbr.rel (%p25) target = $region8
    $region5: #{tpu_custom_call.1} parent=1 // loop_body
      %s29 = ssub.s32 %s24, 1
      %s30 = ssub.s32 %s24, 2
      %s31 = sadd.s32 %s24, 1
      %s33 = sadd.s32 %s32, 1
      %p36 = scmp.eq.s32.totalorder %s24, 1
      %p37 = scmp.ne.s32.totalorder %s32, %s34
      %p38 = scmp.eq.s32.totalorder %s24, 0
      %p39 = por %p37, %p38
      %p40 = scmp.ne.s32.totalorder %s32, %s34
      %p41 = scmp.eq.s32.totalorder %s29, 1
      %p42 = por %p40, %p41
      %p43 = scmp.ne.s32.totalorder %s34, %s35
      %p44 = scmp.eq.s32.totalorder %s29, 0
      %p45 = por %p43, %p44
      %p46 = scmp.ne.s32.totalorder %s34, %s35
      %p47 = scmp.eq.s32.totalorder %s30, 1
      %p48 = por %p46, %p47
      %p50 = scmp.ne.s32.totalorder %s35, %s49
      %p51 = scmp.eq.s32.totalorder %s30, 0
      %p52 = por %p50, %p51
      %s54 = sadd.s32 %s53, 1
      %p57 = scmp.eq.s32.totalorder %s24, 1
      %p58 = scmp.ne.s32.totalorder %s53, %s55
      %p59 = scmp.eq.s32.totalorder %s24, 0
      %p60 = por %p58, %p59
      %p61 = scmp.ne.s32.totalorder %s53, %s55
      %p62 = scmp.eq.s32.totalorder %s29, 1
      %p63 = por %p61, %p62
      %p64 = scmp.ne.s32.totalorder %s55, %s56
      %p65 = scmp.eq.s32.totalorder %s29, 0
      %p66 = por %p64, %p65
      %p67 = scmp.ne.s32.totalorder %s55, %s56
      %p68 = scmp.eq.s32.totalorder %s30, 1
      %p69 = por %p67, %p68
      %p71 = scmp.ne.s32.totalorder %s56, %s70
      %p72 = scmp.eq.s32.totalorder %s30, 0
      %p73 = por %p71, %p72
      %s74 = ssub.s32 %s24, %s31
      %p75 = scmp.eq.s32.totalorder %s74, 0
      %s77 = sadd.s32 %s76, 1
      %s78 = scalar_select %p75, %s76, %s77
      %p81 = pneg %p75
      %p82 = scmp.eq.s32.totalorder %s24, 1
      %p83 = por %p81, %p82
      %p84 = scmp.ne.s32.totalorder %s76, %s79
      %p85 = scmp.eq.s32.totalorder %s24, 0
      %p86 = por %p84, %p85
      %p87 = scmp.ne.s32.totalorder %s76, %s79
      %p88 = scmp.eq.s32.totalorder %s29, 1
      %p89 = por %p87, %p88
      %p90 = scmp.ne.s32.totalorder %s79, %s80
      %p91 = scmp.eq.s32.totalorder %s29, 0
      %p92 = por %p90, %p91
      %p93 = scmp.ne.s32.totalorder %s79, %s80
      %p94 = scmp.eq.s32.totalorder %s30, 1
      %p95 = por %p93, %p94
      %p97 = scmp.ne.s32.totalorder %s80, %s96
      %p98 = scmp.eq.s32.totalorder %s30, 0
      %p99 = por %p97, %p98
      %s101 = sadd.s32 %s100, 1
      %p104 = scmp.eq.s32.totalorder %s24, 1
      %p105 = scmp.ne.s32.totalorder %s100, %s102
      %p106 = scmp.eq.s32.totalorder %s24, 0
      %p107 = por %p105, %p106
      %p108 = scmp.ne.s32.totalorder %s100, %s102
      %p109 = scmp.eq.s32.totalorder %s29, 1
      %p110 = por %p108, %p109
      %p111 = scmp.ne.s32.totalorder %s102, %s103
      %p112 = scmp.eq.s32.totalorder %s29, 0
      %p113 = por %p111, %p112
      %p114 = scmp.ne.s32.totalorder %s102, %s103
      %p115 = scmp.eq.s32.totalorder %s30, 1
      %p116 = por %p114, %p115
      %p118 = scmp.ne.s32.totalorder %s103, %s117
      %p119 = scmp.eq.s32.totalorder %s30, 0
      %p120 = por %p118, %p119
      %s121 = ssub.s32 %s24, %s31
      %p122 = scmp.eq.s32.totalorder %s121, 0
      %s124 = sadd.s32 %s123, 1
      %s125 = scalar_select %p122, %s123, %s124
      %p128 = pneg %p122
      %p129 = scmp.eq.s32.totalorder %s24, 1
      %p130 = por %p128, %p129
      %p131 = scmp.ne.s32.totalorder %s123, %s126
      %p132 = scmp.eq.s32.totalorder %s24, 0
      %p133 = por %p131, %p132
      %p134 = scmp.ne.s32.totalorder %s123, %s126
      %p135 = scmp.eq.s32.totalorder %s29, 1
      %p136 = por %p134, %p135
      %p137 = scmp.ne.s32.totalorder %s126, %s127
      %p138 = scmp.eq.s32.totalorder %s29, 0
      %p139 = por %p137, %p138
      %p140 = scmp.ne.s32.totalorder %s126, %s127
      %p141 = scmp.eq.s32.totalorder %s30, 1
      %p142 = por %p140, %p141
      %p144 = scmp.ne.s32.totalorder %s127, %s143
      %p145 = scmp.eq.s32.totalorder %s30, 0
      %p146 = por %p144, %p145
      %s148 = sadd.s32 %s147, 1
      %p151 = scmp.eq.s32.totalorder %s24, 1
      %p152 = scmp.ne.s32.totalorder %s147, %s149
      %p153 = scmp.eq.s32.totalorder %s24, 0
      %p154 = por %p152, %p153
      %p155 = scmp.ne.s32.totalorder %s147, %s149
      %p156 = scmp.eq.s32.totalorder %s29, 1
      %p157 = por %p155, %p156
      %p158 = scmp.ne.s32.totalorder %s149, %s150
      %p159 = scmp.eq.s32.totalorder %s29, 0
      %p160 = por %p158, %p159
      %p161 = scmp.ne.s32.totalorder %s149, %s150
      %p162 = scmp.eq.s32.totalorder %s30, 1
      %p163 = por %p161, %p162
      %p165 = scmp.ne.s32.totalorder %s150, %s164
      %p166 = scmp.eq.s32.totalorder %s30, 0
      %p167 = por %p165, %p166
      %s168 = ssub.s32 %s24, %s31
      %p169 = scmp.eq.s32.totalorder %s168, 0
      %s171 = sadd.s32 %s170, 1
      %s172 = scalar_select %p169, %s170, %s171
      %p175 = pneg %p169
      %p176 = scmp.eq.s32.totalorder %s24, 1
      %p177 = por %p175, %p176
      %p178 = scmp.ne.s32.totalorder %s170, %s173
      %p179 = scmp.eq.s32.totalorder %s24, 0
      %p180 = por %p178, %p179
      %p181 = scmp.ne.s32.totalorder %s170, %s173
      %p182 = scmp.eq.s32.totalorder %s29, 1
      %p183 = por %p181, %p182
      %p184 = scmp.ne.s32.totalorder %s173, %s174
      %p185 = scmp.eq.s32.totalorder %s29, 0
      %p186 = por %p184, %p185
      %p187 = scmp.ne.s32.totalorder %s173, %s174
      %p188 = scmp.eq.s32.totalorder %s30, 1
      %p189 = por %p187, %p188
      %p191 = scmp.ne.s32.totalorder %s174, %s190
      %p192 = scmp.eq.s32.totalorder %s30, 0
      %p193 = por %p191, %p192
      %s195 = sadd.s32 %s194, 1
      %p198 = scmp.eq.s32.totalorder %s24, 1
      %p199 = scmp.ne.s32.totalorder %s194, %s196
      %p200 = scmp.eq.s32.totalorder %s24, 0
      %p201 = por %p199, %p200
      %p202 = scmp.ne.s32.totalorder %s194, %s196
      %p203 = scmp.eq.s32.totalorder %s29, 1
      %p204 = por %p202, %p203
      %p205 = scmp.ne.s32.totalorder %s196, %s197
      %p206 = scmp.eq.s32.totalorder %s29, 0
      %p207 = por %p205, %p206
      %p208 = scmp.ne.s32.totalorder %s196, %s197
      %p209 = scmp.eq.s32.totalorder %s30, 1
      %p210 = por %p208, %p209
      %p212 = scmp.ne.s32.totalorder %s197, %s211
      %p213 = scmp.eq.s32.totalorder %s30, 0
      %p214 = por %p212, %p213
      %s215 = ssub.s32 %s24, %s31
      %p216 = scmp.eq.s32.totalorder %s215, 0
      %s218 = sadd.s32 %s217, 1
      %s219 = scalar_select %p216, %s217, %s218
      %p222 = pneg %p216
      %p223 = scmp.eq.s32.totalorder %s24, 1
      %p224 = por %p222, %p223
      %p225 = scmp.ne.s32.totalorder %s217, %s220
      %p226 = scmp.eq.s32.totalorder %s24, 0
      %p227 = por %p225, %p226
      %p228 = scmp.ne.s32.totalorder %s217, %s220
      %p229 = scmp.eq.s32.totalorder %s29, 1
      %p230 = por %p228, %p229
      %p231 = scmp.ne.s32.totalorder %s220, %s221
      %p232 = scmp.eq.s32.totalorder %s29, 0
      %p233 = por %p231, %p232
      %p234 = scmp.ne.s32.totalorder %s220, %s221
      %p235 = scmp.eq.s32.totalorder %s30, 1
      %p236 = por %p234, %p235
      %p238 = scmp.ne.s32.totalorder %s221, %s237
      %p239 = scmp.eq.s32.totalorder %s30, 0
      %p240 = por %p238, %p239
      %s242 = sadd.s32 %s241, 1
      %p245 = scmp.eq.s32.totalorder %s24, 1
      %p246 = scmp.ne.s32.totalorder %s241, %s243
      %p247 = scmp.eq.s32.totalorder %s24, 0
      %p248 = por %p246, %p247
      %p249 = scmp.ne.s32.totalorder %s241, %s243
      %p250 = scmp.eq.s32.totalorder %s29, 1
      %p251 = por %p249, %p250
      %p252 = scmp.ne.s32.totalorder %s243, %s244
      %p253 = scmp.eq.s32.totalorder %s29, 0
      %p254 = por %p252, %p253
      %p255 = scmp.ne.s32.totalorder %s243, %s244
      %p256 = scmp.eq.s32.totalorder %s30, 1
      %p257 = por %p255, %p256
      %p259 = scmp.ne.s32.totalorder %s244, %s258
      %p260 = scmp.eq.s32.totalorder %s30, 0
      %p261 = por %p259, %p260
      %s262 = ssub.s32 %s24, %s31
      %p263 = scmp.eq.s32.totalorder %s262, 0
      %s265 = sadd.s32 %s264, 1
      %s266 = scalar_select %p263, %s264, %s265
      %p269 = pneg %p263
      %p270 = scmp.eq.s32.totalorder %s24, 1
      %p271 = por %p269, %p270
      %p272 = scmp.ne.s32.totalorder %s264, %s267
      %p273 = scmp.eq.s32.totalorder %s24, 0
      %p274 = por %p272, %p273
      %p275 = scmp.ne.s32.totalorder %s264, %s267
      %p276 = scmp.eq.s32.totalorder %s29, 1
      %p277 = por %p275, %p276
      %p278 = scmp.ne.s32.totalorder %s267, %s268
      %p279 = scmp.eq.s32.totalorder %s29, 0
      %p280 = por %p278, %p279
      %p281 = scmp.ne.s32.totalorder %s267, %s268
      %p282 = scmp.eq.s32.totalorder %s30, 1
      %p283 = por %p281, %p282
      %p285 = scmp.ne.s32.totalorder %s268, %s284
      %p286 = scmp.eq.s32.totalorder %s30, 0
      %p287 = por %p285, %p286
      %s289 = sadd.s32 %s288, 1
      %p292 = scmp.eq.s32.totalorder %s24, 1
      %p293 = scmp.ne.s32.totalorder %s288, %s290
      %p294 = scmp.eq.s32.totalorder %s24, 0
      %p295 = por %p293, %p294
      %p296 = scmp.ne.s32.totalorder %s288, %s290
      %p297 = scmp.eq.s32.totalorder %s29, 1
      %p298 = por %p296, %p297
      %p299 = scmp.ne.s32.totalorder %s290, %s291
      %p300 = scmp.eq.s32.totalorder %s29, 0
      %p301 = por %p299, %p300
      %p302 = scmp.ne.s32.totalorder %s290, %s291
      %p303 = scmp.eq.s32.totalorder %s30, 1
      %p304 = por %p302, %p303
      %p306 = scmp.ne.s32.totalorder %s291, %s305
      %p307 = scmp.eq.s32.totalorder %s30, 0
      %p308 = por %p306, %p307
      %s309 = ssub.s32 %s24, %s31
      %p310 = scmp.eq.s32.totalorder %s309, 0
      %s312 = sadd.s32 %s311, 1
      %s313 = scalar_select %p310, %s311, %s312
      %p316 = pneg %p310
      %p317 = scmp.eq.s32.totalorder %s24, 1
      %p318 = por %p316, %p317
      %p319 = scmp.ne.s32.totalorder %s311, %s314
      %p320 = scmp.eq.s32.totalorder %s24, 0
      %p321 = por %p319, %p320
      %p322 = scmp.ne.s32.totalorder %s311, %s314
      %p323 = scmp.eq.s32.totalorder %s29, 1
      %p324 = por %p322, %p323
      %p325 = scmp.ne.s32.totalorder %s314, %s315
      %p326 = scmp.eq.s32.totalorder %s29, 0
      %p327 = por %p325, %p326
      %p328 = scmp.ne.s32.totalorder %s314, %s315
      %p329 = scmp.eq.s32.totalorder %s30, 1
      %p330 = por %p328, %p329
      %p332 = scmp.ne.s32.totalorder %s315, %s331
      %p333 = scmp.eq.s32.totalorder %s30, 0
      %p334 = por %p332, %p333
      %s335 = ssub.s32 %s24, %s31
      %p336 = scmp.eq.s32.totalorder %s335, 0
      %s338 = sadd.s32 %s337, 1
      %s339 = scalar_select %p336, %s337, %s338
      %p342 = pneg %p336
      %p343 = scmp.eq.s32.totalorder %s24, 1
      %p344 = por %p342, %p343
      %p345 = scmp.ne.s32.totalorder %s337, %s340
      %p346 = scmp.eq.s32.totalorder %s24, 0
      %p347 = por %p345, %p346
      %p348 = scmp.ne.s32.totalorder %s337, %s340
      %p349 = scmp.eq.s32.totalorder %s29, 1
      %p350 = por %p348, %p349
      %p351 = scmp.ne.s32.totalorder %s340, %s341
      %p352 = scmp.eq.s32.totalorder %s29, 0
      %p353 = por %p351, %p352
      %p354 = scmp.ne.s32.totalorder %s340, %s341
      %p355 = scmp.eq.s32.totalorder %s30, 1
      %p356 = por %p354, %p355
      %p358 = scmp.ne.s32.totalorder %s341, %s357
      %p359 = scmp.eq.s32.totalorder %s30, 0
      %p360 = por %p358, %p359
      %p361 = scmp.le.s32.totalorder 1, %s24
      %p362 = scmp.lt.s32.totalorder %s24, 3
      %p363 = pnand %p361, %p362
      %p364 = pneg %p363
      // Predicated region
      $region9: #{tpu_custom_call.1} parent=5 // pred_check
        _
      $region10: #{tpu_custom_call.1} parent=5 // pred_check_branch
        %366 = sbr.rel (%p363) target = $region12
      $region11: #{tpu_custom_call.1} parent=5 // pred_region
        %s367 = ssub.s32 %s24, 1
        // Predicated region
        $region13: #{tpu_custom_call.1} parent=11 // pred_check
          %p368 = pneg %p45
        $region14: #{tpu_custom_call.1} parent=11 // pred_check_branch
          %370 = sbr.rel (%p368) target = $region16
        $region15: #{tpu_custom_call.1} parent=11 // pred_region
          _
        $region16: #{tpu_custom_call.1} parent=11 // pred_fallthru
          _
        // Predicated region
        $region17: #{tpu_custom_call.1} parent=11 // pred_check
          %p371 = pneg %p66
        $region18: #{tpu_custom_call.1} parent=11 // pred_check_branch
          %373 = sbr.rel (%p371) target = $region20
        $region19: #{tpu_custom_call.1} parent=11 // pred_region
          _
        $region20: #{tpu_custom_call.1} parent=11 // pred_fallthru
          _
        // Predicated region
        $region21: #{tpu_custom_call.1} parent=11 // pred_check
          %p374 = pneg %p113
        $region22: #{tpu_custom_call.1} parent=11 // pred_check_branch
          %376 = sbr.rel (%p374) target = $region24
        $region23: #{tpu_custom_call.1} parent=11 // pred_region
          _
        $region24: #{tpu_custom_call.1} parent=11 // pred_fallthru
          _
        // Predicated region
        $region25: #{tpu_custom_call.1} parent=11 // pred_check
          %p377 = pneg %p160
        $region26: #{tpu_custom_call.1} parent=11 // pred_check_branch
          %379 = sbr.rel (%p377) target = $region28
        $region27: #{tpu_custom_call.1} parent=11 // pred_region
          _
        $region28: #{tpu_custom_call.1} parent=11 // pred_fallthru
          _
        // Predicated region
        $region29: #{tpu_custom_call.1} parent=11 // pred_check
          %p380 = pneg %p207
        $region30: #{tpu_custom_call.1} parent=11 // pred_check_branch
          %382 = sbr.rel (%p380) target = $region32
        $region31: #{tpu_custom_call.1} parent=11 // pred_region
          _
        $region32: #{tpu_custom_call.1} parent=11 // pred_fallthru
          _
        // Predicated region
        $region33: #{tpu_custom_call.1} parent=11 // pred_check
          %p383 = pneg %p254
        $region34: #{tpu_custom_call.1} parent=11 // pred_check_branch
          %385 = sbr.rel (%p383) target = $region36
        $region35: #{tpu_custom_call.1} parent=11 // pred_region
          _
        $region36: #{tpu_custom_call.1} parent=11 // pred_fallthru
          _
        // Predicated region
        $region37: #{tpu_custom_call.1} parent=11 // pred_check
          %p386 = pneg %p301
        $region38: #{tpu_custom_call.1} parent=11 // pred_check_branch
          %388 = sbr.rel (%p386) target = $region40
        $region39: #{tpu_custom_call.1} parent=11 // pred_region
          _
        $region40: #{tpu_custom_call.1} parent=11 // pred_fallthru
          _
      $region12: #{tpu_custom_call.1} parent=5 // pred_fallthru
        _
      %p389 = scmp.lt.s32.totalorder %s24, 2
      // Predicated region
      $region41: #{tpu_custom_call.1} parent=5 // pred_check
        %p390 = pneg %p389
      $region42: #{tpu_custom_call.1} parent=5 // pred_check_branch
        %392 = sbr.rel (%p390) target = $region44
      $region43: #{tpu_custom_call.1} parent=5 // pred_region
        // Predicated region
        $region45: #{tpu_custom_call.1} parent=43 // pred_check
          %p393 = pneg %p86
        $region46: #{tpu_custom_call.1} parent=43 // pred_check_branch
          %395 = sbr.rel (%p393) target = $region48
        $region47: #{tpu_custom_call.1} parent=43 // pred_region
          %s396 = smul.u32 8, %s24
          %p397 = scmp.lt.s32.totalorder %s396, 15
          %s398 = scalar_select %p397, %s396, 15
          %s399 = smul.addr %s398, 4
          %s400 = smul.addr %s399, 8
          %s401 = scalar_lea.vmem %s2, %s400
          %s402 = smul.u32 8, %s24
        $region48: #{tpu_custom_call.1} parent=43 // pred_fallthru
          _
        // Predicated region
        $region49: #{tpu_custom_call.1} parent=43 // pred_check
          %p403 = pneg %p133
        $region50: #{tpu_custom_call.1} parent=43 // pred_check_branch
          %405 = sbr.rel (%p403) target = $region52
        $region51: #{tpu_custom_call.1} parent=43 // pred_region
          %s406 = smul.u32 8, %s24
          %p407 = scmp.lt.s32.totalorder %s406, 15
          %s408 = scalar_select %p407, %s406, 15
          %s409 = scalar_lea.vmem %s4, %s408
          %s410 = smul.u32 8, %s24
        $region52: #{tpu_custom_call.1} parent=43 // pred_fallthru
          _
        // Predicated region
        $region53: #{tpu_custom_call.1} parent=43 // pred_check
          %p411 = pneg %p180
        $region54: #{tpu_custom_call.1} parent=43 // pred_check_branch
          %413 = sbr.rel (%p411) target = $region56
        $region55: #{tpu_custom_call.1} parent=43 // pred_region
          %s414 = smul.u32 8, %s24
          %p415 = scmp.lt.s32.totalorder %s414, 15
          %s416 = scalar_select %p415, %s414, 15
          %s417 = smul.addr %s416, 4
          %s418 = smul.addr %s417, 8
          %s419 = scalar_lea.vmem %s6, %s418
          %s420 = smul.u32 8, %s24
        $region56: #{tpu_custom_call.1} parent=43 // pred_fallthru
          _
        // Predicated region
        $region57: #{tpu_custom_call.1} parent=43 // pred_check
          %p421 = pneg %p227
        $region58: #{tpu_custom_call.1} parent=43 // pred_check_branch
          %423 = sbr.rel (%p421) target = $region60
        $region59: #{tpu_custom_call.1} parent=43 // pred_region
          %s424 = smul.u32 8, %s24
          %p425 = scmp.lt.s32.totalorder %s424, 15
          %s426 = scalar_select %p425, %s424, 15
          %s427 = scalar_lea.vmem %s8, %s426
          %s428 = smul.u32 8, %s24
        $region60: #{tpu_custom_call.1} parent=43 // pred_fallthru
          _
        // Predicated region
        $region61: #{tpu_custom_call.1} parent=43 // pred_check
          %p429 = pneg %p274
        $region62: #{tpu_custom_call.1} parent=43 // pred_check_branch
          %431 = sbr.rel (%p429) target = $region64
        $region63: #{tpu_custom_call.1} parent=43 // pred_region
          %s432 = smul.u32 8, %s24
          %p433 = scmp.lt.s32.totalorder %s432, 15
          %s434 = scalar_select %p433, %s432, 15
          %s435 = scalar_lea.vmem %s10, %s434
          %s436 = smul.u32 8, %s24
        $region64: #{tpu_custom_call.1} parent=43 // pred_fallthru
          _
        // Predicated region
        $region65: #{tpu_custom_call.1} parent=43 // pred_check
          %p437 = pneg %p321
        $region66: #{tpu_custom_call.1} parent=43 // pred_check_branch
          %439 = sbr.rel (%p437) target = $region68
        $region67: #{tpu_custom_call.1} parent=43 // pred_region
          %s440 = smul.u32 8, %s24
          %p441 = scmp.lt.s32.totalorder %s440, 15
          %s442 = scalar_select %p441, %s440, 15
          %s443 = scalar_lea.vmem %s12, %s442
          %s444 = smul.u32 8, %s24
        $region68: #{tpu_custom_call.1} parent=43 // pred_fallthru
          _
      $region44: #{tpu_custom_call.1} parent=5 // pred_fallthru
        _
      %p445 = scmp.le.s32.totalorder 1, %s24
      %p446 = scmp.lt.s32.totalorder %s24, 3
      %p447 = pnand %p445, %p446
      %p448 = pneg %p447
      // Predicated region
      $region69: #{tpu_custom_call.1} parent=5 // pred_check
        _
      $region70: #{tpu_custom_call.1} parent=5 // pred_check_branch
        %450 = sbr.rel (%p447) target = $region72
      $region71: #{tpu_custom_call.1} parent=5 // pred_region
        %s451 = ssub.s32 %s24, 1
        %p452 = pneg %p45
        %p453 = pneg %p42
        %p454 = pneg %p66
        %p455 = pneg %p63
        %s456 = smul.u32 8, %s29
        %p457 = scmp.lt.s32.totalorder %s456, 15
        %s458 = scalar_select %p457, %s456, 15
        %s459 = smul.addr %s458, 4
        %s460 = smul.addr %s459, 8
        %s461 = scalar_lea.vmem %s2, %s460
        %p462 = pneg %p92
        %p463 = pneg %p89
        %p464 = pneg %p113
        %p465 = pneg %p110
        %s466 = smul.u32 8, %s29
        %p467 = scmp.lt.s32.totalorder %s466, 15
        %s468 = scalar_select %p467, %s466, 15
        %s469 = scalar_lea.vmem %s4, %s468
        %p470 = pneg %p139
        %p471 = pneg %p136
        %p472 = pneg %p160
        %p473 = pneg %p157
        %s474 = smul.u32 8, %s29
        %p475 = scmp.lt.s32.totalorder %s474, 15
        %s476 = scalar_select %p475, %s474, 15
        %s477 = smul.addr %s476, 4
        %s478 = smul.addr %s477, 8
        %s479 = scalar_lea.vmem %s6, %s478
        %p480 = pneg %p186
        %p481 = pneg %p183
        %p482 = pneg %p207
        %p483 = pneg %p204
        %s484 = smul.u32 8, %s29
        %p485 = scmp.lt.s32.totalorder %s484, 15
        %s486 = scalar_select %p485, %s484, 15
        %s487 = scalar_lea.vmem %s8, %s486
        %p488 = pneg %p233
        %p489 = pneg %p230
        %p490 = pneg %p254
        %p491 = pneg %p251
        %s492 = smul.u32 8, %s29
        %p493 = scmp.lt.s32.totalorder %s492, 15
        %s494 = scalar_select %p493, %s492, 15
        %s495 = scalar_lea.vmem %s10, %s494
        %p496 = pneg %p280
        %p497 = pneg %p277
        %p498 = pneg %p301
        %p499 = pneg %p298
        %s500 = smul.u32 8, %s29
        %p501 = scmp.lt.s32.totalorder %s500, 15
        %s502 = scalar_select %p501, %s500, 15
        %s503 = scalar_lea.vmem %s12, %s502
        %p504 = pneg %p327
        %p505 = pneg %p324
        %p506 = pneg %p353
        %p507 = pneg %p350
        %s508 = sand.u32 %s340, 1
        %s509 = scalar_lea.sflag [#allocation4], %s508
        %s510 = sand.u32 %s340, 1
        %s511 = smul.addr %s510, 4
        %s512 = scalar_lea.vmem [#allocation3], %s511
        %s513 = smul.u32 8, %s29
        %p514 = scmp.lt.s32.totalorder %s513, 15
        %s515 = scalar_select %p514, %s513, 15
        %s516 = smul.addr %s515, 4
        %s517 = smul.addr %s516, 8
        %s518 = scalar_lea.vmem %s2, %s517
        %s519 = smul.u32 8, %s29
        %s520 = smul.u32 8, %s29
        %p521 = scmp.lt.s32.totalorder %s520, 15
        %s522 = scalar_select %p521, %s520, 15
        %s523 = scalar_lea.vmem %s4, %s522
        %s524 = smul.u32 8, %s29
        %s525 = smul.u32 8, %s29
        %p526 = scmp.lt.s32.totalorder %s525, 15
        %s527 = scalar_select %p526, %s525, 15
        %s528 = smul.addr %s527, 4
        %s529 = smul.addr %s528, 8
        %s530 = scalar_lea.vmem %s6, %s529
        %s531 = smul.u32 8, %s29
        %s532 = smul.u32 8, %s29
        %p533 = scmp.lt.s32.totalorder %s532, 15
        %s534 = scalar_select %p533, %s532, 15
        %s535 = scalar_lea.vmem %s8, %s534
        %s536 = smul.u32 8, %s29
        %s537 = smul.u32 8, %s29
        %p538 = scmp.lt.s32.totalorder %s537, 15
        %s539 = scalar_select %p538, %s537, 15
        %s540 = scalar_lea.vmem %s10, %s539
        %s541 = smul.u32 8, %s29
        %s542 = smul.u32 8, %s29
        %p543 = scmp.lt.s32.totalorder %s542, 15
        %s544 = scalar_select %p543, %s542, 15
        %s545 = scalar_lea.vmem %s12, %s544
        %s546 = smul.u32 8, %s29
        %v547 = vld [vmem:[%s0] sm:$0xf]
        %v548 = vld [vmem:[%s1] sm:$0xff]
        %v549 = vld [vmem:[%s1 + $0x8] sm:$0xff]
        %v550 = vld [vmem:[%s1 + $0x10] sm:$0xff]
        %v551 = vld [vmem:[%s1 + $0x18] sm:$0xff]
        %v552 = vld [vmem:[%s518] sm:$0xff]
        %v553 = vld [vmem:[%s518 + $0x8] sm:$0xff]
        %v554 = vld [vmem:[%s518 + $0x10] sm:$0xff]
        %v555 = vld [vmem:[%s518 + $0x18] sm:$0xff]
        %v556 = vld [vmem:[%s518 + $0x20] sm:$0xff]
        %v557 = vld [vmem:[%s518 + $0x28] sm:$0xff]
        %v558 = vld [vmem:[%s518 + $0x30] sm:$0xff]
        %v559 = vld [vmem:[%s518 + $0x38] sm:$0xff]
        %v560 = vld [vmem:[%s518 + $0x40] sm:$0xff]
        %v561 = vld [vmem:[%s518 + $0x48] sm:$0xff]
        %v562 = vld [vmem:[%s518 + $0x50] sm:$0xff]
        %v563 = vld [vmem:[%s518 + $0x58] sm:$0xff]
        %v564 = vld [vmem:[%s518 + $0x60] sm:$0xff]
        %v565 = vld [vmem:[%s518 + $0x68] sm:$0xff]
        %v566 = vld [vmem:[%s518 + $0x70] sm:$0xff]
        %v567 = vld [vmem:[%s518 + $0x78] sm:$0xff]
        %v568 = vld [vmem:[%s518 + $0x80] sm:$0xff]
        %v569 = vld [vmem:[%s518 + $0x88] sm:$0xff]
        %v570 = vld [vmem:[%s518 + $0x90] sm:$0xff]
        %v571 = vld [vmem:[%s518 + $0x98] sm:$0xff]
        %v572 = vld [vmem:[%s518 + $0xa0] sm:$0xff]
        %v573 = vld [vmem:[%s518 + $0xa8] sm:$0xff]
        %v574 = vld [vmem:[%s518 + $0xb0] sm:$0xff]
        %v575 = vld [vmem:[%s518 + $0xb8] sm:$0xff]
        %v576 = vld [vmem:[%s518 + $0xc0] sm:$0xff]
        %v577 = vld [vmem:[%s518 + $0xc8] sm:$0xff]
        %v578 = vld [vmem:[%s518 + $0xd0] sm:$0xff]
        %v579 = vld [vmem:[%s518 + $0xd8] sm:$0xff]
        %v580 = vld [vmem:[%s518 + $0xe0] sm:$0xff]
        %v581 = vld [vmem:[%s518 + $0xe8] sm:$0xff]
        %v582 = vld [vmem:[%s518 + $0xf0] sm:$0xff]
        %v583 = vld [vmem:[%s518 + $0xf8] sm:$0xff]
        %v584 = vld [vmem:[%s3] sm:$0x1]
        %v585 = vld [vmem:[%s523] sm:$0x1]
        %v586 = vld [vmem:[%s523 + $0x1] sm:$0x1]
        %v587 = vld [vmem:[%s523 + $0x2] sm:$0x1]
        %v588 = vld [vmem:[%s523 + $0x3] sm:$0x1]
        %v589 = vld [vmem:[%s523 + $0x4] sm:$0x1]
        %v590 = vld [vmem:[%s523 + $0x5] sm:$0x1]
        %v591 = vld [vmem:[%s523 + $0x6] sm:$0x1]
        %v592 = vld [vmem:[%s523 + $0x7] sm:$0x1]
        %v593 = vmul.f32 %v585, 0.1
        %v594 = vmul.f32 %v586, 0.1
        %v595 = vmul.f32 %v587, 0.1
        %v596 = vmul.f32 %v588, 0.1
        %v597 = vmul.f32 %v589, 0.1
        %v598 = vmul.f32 %v590, 0.1
        %v599 = vmul.f32 %v591, 0.1
        %v600 = vmul.f32 %v592, 0.1
        %v601 = vadd.f32 %v584, %v593
        %v602 = vadd.f32 %v584, %v594
        %v603 = vadd.f32 %v584, %v595
        %v604 = vadd.f32 %v584, %v596
        %v605 = vadd.f32 %v584, %v597
        %v606 = vadd.f32 %v584, %v598
        %v607 = vadd.f32 %v584, %v599
        %v608 = vadd.f32 %v584, %v600
        %vm609 = vcmask 130048
        %v611 = vsel %vm609, %v547, 0
        %v614 = vsel %vm609, %v548, 0
        %v617 = vsel %vm609, %v549, 0
        %v620 = vsel %vm609, %v550, 0
        %v623 = vsel %vm609, %v551, 0
        %625 = vmatprep.subr.mxu0 0.0
        %626 = vmatpush1.xpose.msra.mxu0 0.0
        %627 = vmatprep.subr.mxu0 0.0
        %628 = vmatpush1.xpose.msra.mxu0 0.0
        %629 = vmatprep.subr.mxu0 0.0
        %630 = vmatpush1.xpose.msra.mxu0 0.0
        %631 = vmatprep.subr.mxu0 0.0
        %632 = vmatpush1.xpose.msra.mxu0 0.0
        %633 = vmatprep.subr.mxu0 0.0
        %634 = vmatpush1.xpose.msra.mxu0 0.0
        %635 = vmatprep.subr.mxu0 0.0
        %636 = vmatpush1.xpose.msra.mxu0 0.0
        %637 = vmatprep.subr.mxu0 0.0
        %638 = vmatpush1.xpose.msra.mxu0 0.0
        %639 = vmatprep.subr.mxu0 0.0
        %640 = vmatpush1.xpose.msra.mxu0 0.0
        %641 = vmatprep.subr.mxu0 0.0
        %642 = vmatpush1.xpose.msra.mxu0 0.0
        %643 = vmatprep.subr.mxu0 0.0
        %644 = vmatpush1.xpose.msra.mxu0 0.0
        %645 = vmatprep.subr.mxu0 0.0
        %646 = vmatpush1.xpose.msra.mxu0 0.0
        %647 = vmatprep.subr.mxu0 0.0
        %648 = vmatpush1.xpose.msra.mxu0 0.0
        %649 = vmatprep.subr.mxu0 0.0
        %650 = vmatpush1.xpose.msra.mxu0 %v623
        %651 = vmatprep.subr.mxu0 0.0
        %652 = vmatpush1.xpose.msra.mxu0 %v620
        %653 = vmatprep.subr.mxu0 0.0
        %654 = vmatpush1.xpose.msra.mxu0 %v617
        %655 = vmatprep.subr.mxu0 0.0
        %656 = vmatpush1.xpose.msra.mxu0 %v614
        %657 = vmatprep.subr.mxu0 0.0
        %658 = vmatpush2.xpose.msra.mxu0 0.0
        %659 = vmatprep.subr.mxu0 0.0
        %660 = vmatpush2.xpose.msra.mxu0 0.0
        %661 = vmatprep.subr.mxu0 0.0
        %662 = vmatpush2.xpose.msra.mxu0 0.0
        %663 = vmatprep.subr.mxu0 0.0
        %664 = vmatpush2.xpose.msra.mxu0 0.0
        %665 = vmatprep.subr.mxu0 0.0
        %666 = vmatpush2.xpose.msra.mxu0 0.0
        %667 = vmatprep.subr.mxu0 0.0
        %668 = vmatpush2.xpose.msra.mxu0 0.0
        %669 = vmatprep.subr.mxu0 0.0
        %670 = vmatpush2.xpose.msra.mxu0 0.0
        %671 = vmatprep.subr.mxu0 0.0
        %672 = vmatpush2.xpose.msra.mxu0 0.0
        %673 = vmatprep.subr.mxu0 0.0
        %674 = vmatpush2.xpose.msra.mxu0 0.0
        %675 = vmatprep.subr.mxu0 0.0
        %676 = vmatpush2.xpose.msra.mxu0 0.0
        %677 = vmatprep.subr.mxu0 0.0
        %678 = vmatpush2.xpose.msra.mxu0 0.0
        %679 = vmatprep.subr.mxu0 0.0
        %680 = vmatpush2.xpose.msra.mxu0 0.0
        %681 = vmatprep.subr.mxu0 0.0
        %682 = vmatpush2.xpose.msra.mxu0 0.0
        %683 = vmatprep.subr.mxu0 0.0
        %684 = vmatpush2.xpose.msra.mxu0 0.0
        %685 = vmatprep.subr.mxu0 0.0
        %686 = vmatpush2.xpose.msra.mxu0 0.0
        %687 = vmatprep.subr.mxu0 0.0
        %688 = vmatpush2.xpose.msra.mxu0 0.0
        %689 = vmatprep.mubr.f32.mxu0 0.0
        %690 = vmatmul.mubr.f32.gmra.mxu0 %v611
        %v691 = vpop.f32.mrf.mxu0
        %v692 = vadd.f32 0.0, %v691
        %v693 = vpop.f32.mrf.mxu0
        %694 = vdwg.mxu0
        %v696 = vsel %vm609, %v552, 0
        %v699 = vsel %vm609, %v553, 0
        %v702 = vsel %vm609, %v554, 0
        %v705 = vsel %vm609, %v555, 0
        %707 = vmatprep.subr.mxu0 0.0
        %708 = vmatpush1.xpose.msra.mxu0 0.0
        %709 = vmatprep.subr.mxu0 0.0
        %710 = vmatpush1.xpose.msra.mxu0 0.0
        %711 = vmatprep.subr.mxu0 0.0
        %712 = vmatpush1.xpose.msra.mxu0 0.0
        %713 = vmatprep.subr.mxu0 0.0
        %714 = vmatpush1.xpose.msra.mxu0 0.0
        %715 = vmatprep.subr.mxu0 0.0
        %716 = vmatpush1.xpose.msra.mxu0 0.0
        %717 = vmatprep.subr.mxu0 0.0
        %718 = vmatpush1.xpose.msra.mxu0 0.0
        %719 = vmatprep.subr.mxu0 0.0
        %720 = vmatpush1.xpose.msra.mxu0 0.0
        %721 = vmatprep.subr.mxu0 0.0
        %722 = vmatpush1.xpose.msra.mxu0 0.0
        %723 = vmatprep.subr.mxu0 0.0
        %724 = vmatpush1.xpose.msra.mxu0 0.0
        %725 = vmatprep.subr.mxu0 0.0
        %726 = vmatpush1.xpose.msra.mxu0 0.0
        %727 = vmatprep.subr.mxu0 0.0
        %728 = vmatpush1.xpose.msra.mxu0 0.0
        %729 = vmatprep.subr.mxu0 0.0
        %730 = vmatpush1.xpose.msra.mxu0 0.0
        %731 = vmatprep.subr.mxu0 0.0
        %732 = vmatpush1.xpose.msra.mxu0 %v705
        %733 = vmatprep.subr.mxu0 0.0
        %734 = vmatpush1.xpose.msra.mxu0 %v702
        %735 = vmatprep.subr.mxu0 0.0
        %736 = vmatpush1.xpose.msra.mxu0 %v699
        %737 = vmatprep.subr.mxu0 0.0
        %738 = vmatpush1.xpose.msra.mxu0 %v696
        %739 = vmatprep.subr.mxu0 0.0
        %740 = vmatpush2.xpose.msra.mxu0 0.0
        %741 = vmatprep.subr.mxu0 0.0
        %742 = vmatpush2.xpose.msra.mxu0 0.0
        %743 = vmatprep.subr.mxu0 0.0
        %744 = vmatpush2.xpose.msra.mxu0 0.0
        %745 = vmatprep.subr.mxu0 0.0
        %746 = vmatpush2.xpose.msra.mxu0 0.0
        %747 = vmatprep.subr.mxu0 0.0
        %748 = vmatpush2.xpose.msra.mxu0 0.0
        %749 = vmatprep.subr.mxu0 0.0
        %750 = vmatpush2.xpose.msra.mxu0 0.0
        %751 = vmatprep.subr.mxu0 0.0
        %752 = vmatpush2.xpose.msra.mxu0 0.0
        %753 = vmatprep.subr.mxu0 0.0
        %754 = vmatpush2.xpose.msra.mxu0 0.0
        %755 = vmatprep.subr.mxu0 0.0
        %756 = vmatpush2.xpose.msra.mxu0 0.0
        %757 = vmatprep.subr.mxu0 0.0
        %758 = vmatpush2.xpose.msra.mxu0 0.0
        %759 = vmatprep.subr.mxu0 0.0
        %760 = vmatpush2.xpose.msra.mxu0 0.0
        %761 = vmatprep.subr.mxu0 0.0
        %762 = vmatpush2.xpose.msra.mxu0 0.0
        %763 = vmatprep.subr.mxu0 0.0
        %764 = vmatpush2.xpose.msra.mxu0 0.0
        %765 = vmatprep.subr.mxu0 0.0
        %766 = vmatpush2.xpose.msra.mxu0 0.0
        %767 = vmatprep.subr.mxu0 0.0
        %768 = vmatpush2.xpose.msra.mxu0 0.0
        %769 = vmatprep.subr.mxu0 0.0
        %770 = vmatpush2.xpose.msra.mxu0 0.0
        %771 = vmatprep.mubr.f32.mxu0 0.0
        %772 = vmatmul.mubr.f32.gmra.mxu0 %v611
        %v773 = vpop.f32.mrf.mxu0
        %v774 = vadd.f32 0.0, %v773
        %v775 = vpop.f32.mrf.mxu0
        %776 = vdwg.mxu0
        %v778 = vsel %vm609, %v556, 0
        %v781 = vsel %vm609, %v557, 0
        %v784 = vsel %vm609, %v558, 0
        %v787 = vsel %vm609, %v559, 0
        %789 = vmatprep.subr.mxu0 0.0
        %790 = vmatpush1.xpose.msra.mxu0 0.0
        %791 = vmatprep.subr.mxu0 0.0
        %792 = vmatpush1.xpose.msra.mxu0 0.0
        %793 = vmatprep.subr.mxu0 0.0
        %794 = vmatpush1.xpose.msra.mxu0 0.0
        %795 = vmatprep.subr.mxu0 0.0
        %796 = vmatpush1.xpose.msra.mxu0 0.0
        %797 = vmatprep.subr.mxu0 0.0
        %798 = vmatpush1.xpose.msra.mxu0 0.0
        %799 = vmatprep.subr.mxu0 0.0
        %800 = vmatpush1.xpose.msra.mxu0 0.0
        %801 = vmatprep.subr.mxu0 0.0
        %802 = vmatpush1.xpose.msra.mxu0 0.0
        %803 = vmatprep.subr.mxu0 0.0
        %804 = vmatpush1.xpose.msra.mxu0 0.0
        %805 = vmatprep.subr.mxu0 0.0
        %806 = vmatpush1.xpose.msra.mxu0 0.0
        %807 = vmatprep.subr.mxu0 0.0
        %808 = vmatpush1.xpose.msra.mxu0 0.0
        %809 = vmatprep.subr.mxu0 0.0
        %810 = vmatpush1.xpose.msra.mxu0 0.0
        %811 = vmatprep.subr.mxu0 0.0
        %812 = vmatpush1.xpose.msra.mxu0 0.0
        %813 = vmatprep.subr.mxu0 0.0
        %814 = vmatpush1.xpose.msra.mxu0 %v787
        %815 = vmatprep.subr.mxu0 0.0
        %816 = vmatpush1.xpose.msra.mxu0 %v784
        %817 = vmatprep.subr.mxu0 0.0
        %818 = vmatpush1.xpose.msra.mxu0 %v781
        %819 = vmatprep.subr.mxu0 0.0
        %820 = vmatpush1.xpose.msra.mxu0 %v778
        %821 = vmatprep.subr.mxu0 0.0
        %822 = vmatpush2.xpose.msra.mxu0 0.0
        %823 = vmatprep.subr.mxu0 0.0
        %824 = vmatpush2.xpose.msra.mxu0 0.0
        %825 = vmatprep.subr.mxu0 0.0
        %826 = vmatpush2.xpose.msra.mxu0 0.0
        %827 = vmatprep.subr.mxu0 0.0
        %828 = vmatpush2.xpose.msra.mxu0 0.0
        %829 = vmatprep.subr.mxu0 0.0
        %830 = vmatpush2.xpose.msra.mxu0 0.0
        %831 = vmatprep.subr.mxu0 0.0
        %832 = vmatpush2.xpose.msra.mxu0 0.0
        %833 = vmatprep.subr.mxu0 0.0
        %834 = vmatpush2.xpose.msra.mxu0 0.0
        %835 = vmatprep.subr.mxu0 0.0
        %836 = vmatpush2.xpose.msra.mxu0 0.0
        %837 = vmatprep.subr.mxu0 0.0
        %838 = vmatpush2.xpose.msra.mxu0 0.0
        %839 = vmatprep.subr.mxu0 0.0
        %840 = vmatpush2.xpose.msra.mxu0 0.0
        %841 = vmatprep.subr.mxu0 0.0
        %842 = vmatpush2.xpose.msra.mxu0 0.0
        %843 = vmatprep.subr.mxu0 0.0
        %844 = vmatpush2.xpose.msra.mxu0 0.0
        %845 = vmatprep.subr.mxu0 0.0
        %846 = vmatpush2.xpose.msra.mxu0 0.0
        %847 = vmatprep.subr.mxu0 0.0
        %848 = vmatpush2.xpose.msra.mxu0 0.0
        %849 = vmatprep.subr.mxu0 0.0
        %850 = vmatpush2.xpose.msra.mxu0 0.0
        %851 = vmatprep.subr.mxu0 0.0
        %852 = vmatpush2.xpose.msra.mxu0 0.0
        %853 = vmatprep.mubr.f32.mxu0 0.0
        %854 = vmatmul.mubr.f32.gmra.mxu0 %v611
        %v855 = vpop.f32.mrf.mxu0
        %v856 = vadd.f32 0.0, %v855
        %v857 = vpop.f32.mrf.mxu0
        %858 = vdwg.mxu0
        %v860 = vsel %vm609, %v560, 0
        %v863 = vsel %vm609, %v561, 0
        %v866 = vsel %vm609, %v562, 0
        %v869 = vsel %vm609, %v563, 0
        %871 = vmatprep.subr.mxu0 0.0
        %872 = vmatpush1.xpose.msra.mxu0 0.0
        %873 = vmatprep.subr.mxu0 0.0
        %874 = vmatpush1.xpose.msra.mxu0 0.0
        %875 = vmatprep.subr.mxu0 0.0
        %876 = vmatpush1.xpose.msra.mxu0 0.0
        %877 = vmatprep.subr.mxu0 0.0
        %878 = vmatpush1.xpose.msra.mxu0 0.0
        %879 = vmatprep.subr.mxu0 0.0
        %880 = vmatpush1.xpose.msra.mxu0 0.0
        %881 = vmatprep.subr.mxu0 0.0
        %882 = vmatpush1.xpose.msra.mxu0 0.0
        %883 = vmatprep.subr.mxu0 0.0
        %884 = vmatpush1.xpose.msra.mxu0 0.0
        %885 = vmatprep.subr.mxu0 0.0
        %886 = vmatpush1.xpose.msra.mxu0 0.0
        %887 = vmatprep.subr.mxu0 0.0
        %888 = vmatpush1.xpose.msra.mxu0 0.0
        %889 = vmatprep.subr.mxu0 0.0
        %890 = vmatpush1.xpose.msra.mxu0 0.0
        %891 = vmatprep.subr.mxu0 0.0
        %892 = vmatpush1.xpose.msra.mxu0 0.0
        %893 = vmatprep.subr.mxu0 0.0
        %894 = vmatpush1.xpose.msra.mxu0 0.0
        %895 = vmatprep.subr.mxu0 0.0
        %896 = vmatpush1.xpose.msra.mxu0 %v869
        %897 = vmatprep.subr.mxu0 0.0
        %898 = vmatpush1.xpose.msra.mxu0 %v866
        %899 = vmatprep.subr.mxu0 0.0
        %900 = vmatpush1.xpose.msra.mxu0 %v863
        %901 = vmatprep.subr.mxu0 0.0
        %902 = vmatpush1.xpose.msra.mxu0 %v860
        %903 = vmatprep.subr.mxu0 0.0
        %904 = vmatpush2.xpose.msra.mxu0 0.0
        %905 = vmatprep.subr.mxu0 0.0
        %906 = vmatpush2.xpose.msra.mxu0 0.0
        %907 = vmatprep.subr.mxu0 0.0
        %908 = vmatpush2.xpose.msra.mxu0 0.0
        %909 = vmatprep.subr.mxu0 0.0
        %910 = vmatpush2.xpose.msra.mxu0 0.0
        %911 = vmatprep.subr.mxu0 0.0
        %912 = vmatpush2.xpose.msra.mxu0 0.0
        %913 = vmatprep.subr.mxu0 0.0
        %914 = vmatpush2.xpose.msra.mxu0 0.0
        %915 = vmatprep.subr.mxu0 0.0
        %916 = vmatpush2.xpose.msra.mxu0 0.0
        %917 = vmatprep.subr.mxu0 0.0
        %918 = vmatpush2.xpose.msra.mxu0 0.0
        %919 = vmatprep.subr.mxu0 0.0
        %920 = vmatpush2.xpose.msra.mxu0 0.0
        %921 = vmatprep.subr.mxu0 0.0
        %922 = vmatpush2.xpose.msra.mxu0 0.0
        %923 = vmatprep.subr.mxu0 0.0
        %924 = vmatpush2.xpose.msra.mxu0 0.0
        %925 = vmatprep.subr.mxu0 0.0
        %926 = vmatpush2.xpose.msra.mxu0 0.0
        %927 = vmatprep.subr.mxu0 0.0
        %928 = vmatpush2.xpose.msra.mxu0 0.0
        %929 = vmatprep.subr.mxu0 0.0
        %930 = vmatpush2.xpose.msra.mxu0 0.0
        %931 = vmatprep.subr.mxu0 0.0
        %932 = vmatpush2.xpose.msra.mxu0 0.0
        %933 = vmatprep.subr.mxu0 0.0
        %934 = vmatpush2.xpose.msra.mxu0 0.0
        %935 = vmatprep.mubr.f32.mxu0 0.0
        %936 = vmatmul.mubr.f32.gmra.mxu0 %v611
        %v937 = vpop.f32.mrf.mxu0
        %v938 = vadd.f32 0.0, %v937
        %v939 = vpop.f32.mrf.mxu0
        %940 = vdwg.mxu0
        %v942 = vsel %vm609, %v564, 0
        %v945 = vsel %vm609, %v565, 0
        %v948 = vsel %vm609, %v566, 0
        %v951 = vsel %vm609, %v567, 0
        %953 = vmatprep.subr.mxu0 0.0
        %954 = vmatpush1.xpose.msra.mxu0 0.0
        %955 = vmatprep.subr.mxu0 0.0
        %956 = vmatpush1.xpose.msra.mxu0 0.0
        %957 = vmatprep.subr.mxu0 0.0
        %958 = vmatpush1.xpose.msra.mxu0 0.0
        %959 = vmatprep.subr.mxu0 0.0
        %960 = vmatpush1.xpose.msra.mxu0 0.0
        %961 = vmatprep.subr.mxu0 0.0
        %962 = vmatpush1.xpose.msra.mxu0 0.0
        %963 = vmatprep.subr.mxu0 0.0
        %964 = vmatpush1.xpose.msra.mxu0 0.0
        %965 = vmatprep.subr.mxu0 0.0
        %966 = vmatpush1.xpose.msra.mxu0 0.0
        %967 = vmatprep.subr.mxu0 0.0
        %968 = vmatpush1.xpose.msra.mxu0 0.0
        %969 = vmatprep.subr.mxu0 0.0
        %970 = vmatpush1.xpose.msra.mxu0 0.0
        %971 = vmatprep.subr.mxu0 0.0
        %972 = vmatpush1.xpose.msra.mxu0 0.0
        %973 = vmatprep.subr.mxu0 0.0
        %974 = vmatpush1.xpose.msra.mxu0 0.0
        %975 = vmatprep.subr.mxu0 0.0
        %976 = vmatpush1.xpose.msra.mxu0 0.0
        %977 = vmatprep.subr.mxu0 0.0
        %978 = vmatpush1.xpose.msra.mxu0 %v951
        %979 = vmatprep.subr.mxu0 0.0
        %980 = vmatpush1.xpose.msra.mxu0 %v948
        %981 = vmatprep.subr.mxu0 0.0
        %982 = vmatpush1.xpose.msra.mxu0 %v945
        %983 = vmatprep.subr.mxu0 0.0
        %984 = vmatpush1.xpose.msra.mxu0 %v942
        %985 = vmatprep.subr.mxu0 0.0
        %986 = vmatpush2.xpose.msra.mxu0 0.0
        %987 = vmatprep.subr.mxu0 0.0
        %988 = vmatpush2.xpose.msra.mxu0 0.0
        %989 = vmatprep.subr.mxu0 0.0
        %990 = vmatpush2.xpose.msra.mxu0 0.0
        %991 = vmatprep.subr.mxu0 0.0
        %992 = vmatpush2.xpose.msra.mxu0 0.0
        %993 = vmatprep.subr.mxu0 0.0
        %994 = vmatpush2.xpose.msra.mxu0 0.0
        %995 = vmatprep.subr.mxu0 0.0
        %996 = vmatpush2.xpose.msra.mxu0 0.0
        %997 = vmatprep.subr.mxu0 0.0
        %998 = vmatpush2.xpose.msra.mxu0 0.0
        %999 = vmatprep.subr.mxu0 0.0
        %1000 = vmatpush2.xpose.msra.mxu0 0.0
        %1001 = vmatprep.subr.mxu0 0.0
        %1002 = vmatpush2.xpose.msra.mxu0 0.0
        %1003 = vmatprep.subr.mxu0 0.0
        %1004 = vmatpush2.xpose.msra.mxu0 0.0
        %1005 = vmatprep.subr.mxu0 0.0
        %1006 = vmatpush2.xpose.msra.mxu0 0.0
        %1007 = vmatprep.subr.mxu0 0.0
        %1008 = vmatpush2.xpose.msra.mxu0 0.0
        %1009 = vmatprep.subr.mxu0 0.0
        %1010 = vmatpush2.xpose.msra.mxu0 0.0
        %1011 = vmatprep.subr.mxu0 0.0
        %1012 = vmatpush2.xpose.msra.mxu0 0.0
        %1013 = vmatprep.subr.mxu0 0.0
        %1014 = vmatpush2.xpose.msra.mxu0 0.0
        %1015 = vmatprep.subr.mxu0 0.0
        %1016 = vmatpush2.xpose.msra.mxu0 0.0
        %1017 = vmatprep.mubr.f32.mxu0 0.0
        %1018 = vmatmul.mubr.f32.gmra.mxu0 %v611
        %v1019 = vpop.f32.mrf.mxu0
        %v1020 = vadd.f32 0.0, %v1019
        %v1021 = vpop.f32.mrf.mxu0
        %1022 = vdwg.mxu0
        %v1024 = vsel %vm609, %v568, 0
        %v1027 = vsel %vm609, %v569, 0
        %v1030 = vsel %vm609, %v570, 0
        %v1033 = vsel %vm609, %v571, 0
        %1035 = vmatprep.subr.mxu0 0.0
        %1036 = vmatpush1.xpose.msra.mxu0 0.0
        %1037 = vmatprep.subr.mxu0 0.0
        %1038 = vmatpush1.xpose.msra.mxu0 0.0
        %1039 = vmatprep.subr.mxu0 0.0
        %1040 = vmatpush1.xpose.msra.mxu0 0.0
        %1041 = vmatprep.subr.mxu0 0.0
        %1042 = vmatpush1.xpose.msra.mxu0 0.0
        %1043 = vmatprep.subr.mxu0 0.0
        %1044 = vmatpush1.xpose.msra.mxu0 0.0
        %1045 = vmatprep.subr.mxu0 0.0
        %1046 = vmatpush1.xpose.msra.mxu0 0.0
        %1047 = vmatprep.subr.mxu0 0.0
        %1048 = vmatpush1.xpose.msra.mxu0 0.0
        %1049 = vmatprep.subr.mxu0 0.0
        %1050 = vmatpush1.xpose.msra.mxu0 0.0
        %1051 = vmatprep.subr.mxu0 0.0
        %1052 = vmatpush1.xpose.msra.mxu0 0.0
        %1053 = vmatprep.subr.mxu0 0.0
        %1054 = vmatpush1.xpose.msra.mxu0 0.0
        %1055 = vmatprep.subr.mxu0 0.0
        %1056 = vmatpush1.xpose.msra.mxu0 0.0
        %1057 = vmatprep.subr.mxu0 0.0
        %1058 = vmatpush1.xpose.msra.mxu0 0.0
        %1059 = vmatprep.subr.mxu0 0.0
        %1060 = vmatpush1.xpose.msra.mxu0 %v1033
        %1061 = vmatprep.subr.mxu0 0.0
        %1062 = vmatpush1.xpose.msra.mxu0 %v1030
        %1063 = vmatprep.subr.mxu0 0.0
        %1064 = vmatpush1.xpose.msra.mxu0 %v1027
        %1065 = vmatprep.subr.mxu0 0.0
        %1066 = vmatpush1.xpose.msra.mxu0 %v1024
        %1067 = vmatprep.subr.mxu0 0.0
        %1068 = vmatpush2.xpose.msra.mxu0 0.0
        %1069 = vmatprep.subr.mxu0 0.0
        %1070 = vmatpush2.xpose.msra.mxu0 0.0
        %1071 = vmatprep.subr.mxu0 0.0
        %1072 = vmatpush2.xpose.msra.mxu0 0.0
        %1073 = vmatprep.subr.mxu0 0.0
        %1074 = vmatpush2.xpose.msra.mxu0 0.0
        %1075 = vmatprep.subr.mxu0 0.0
        %1076 = vmatpush2.xpose.msra.mxu0 0.0
        %1077 = vmatprep.subr.mxu0 0.0
        %1078 = vmatpush2.xpose.msra.mxu0 0.0
        %1079 = vmatprep.subr.mxu0 0.0
        %1080 = vmatpush2.xpose.msra.mxu0 0.0
        %1081 = vmatprep.subr.mxu0 0.0
        %1082 = vmatpush2.xpose.msra.mxu0 0.0
        %1083 = vmatprep.subr.mxu0 0.0
        %1084 = vmatpush2.xpose.msra.mxu0 0.0
        %1085 = vmatprep.subr.mxu0 0.0
        %1086 = vmatpush2.xpose.msra.mxu0 0.0
        %1087 = vmatprep.subr.mxu0 0.0
        %1088 = vmatpush2.xpose.msra.mxu0 0.0
        %1089 = vmatprep.subr.mxu0 0.0
        %1090 = vmatpush2.xpose.msra.mxu0 0.0
        %1091 = vmatprep.subr.mxu0 0.0
        %1092 = vmatpush2.xpose.msra.mxu0 0.0
        %1093 = vmatprep.subr.mxu0 0.0
        %1094 = vmatpush2.xpose.msra.mxu0 0.0
        %1095 = vmatprep.subr.mxu0 0.0
        %1096 = vmatpush2.xpose.msra.mxu0 0.0
        %1097 = vmatprep.subr.mxu0 0.0
        %1098 = vmatpush2.xpose.msra.mxu0 0.0
        %1099 = vmatprep.mubr.f32.mxu0 0.0
        %1100 = vmatmul.mubr.f32.gmra.mxu0 %v611
        %v1101 = vpop.f32.mrf.mxu0
        %v1102 = vadd.f32 0.0, %v1101
        %v1103 = vpop.f32.mrf.mxu0
        %1104 = vdwg.mxu0
        %v1106 = vsel %vm609, %v572, 0
        %v1109 = vsel %vm609, %v573, 0
        %v1112 = vsel %vm609, %v574, 0
        %v1115 = vsel %vm609, %v575, 0
        %1117 = vmatprep.subr.mxu0 0.0
        %1118 = vmatpush1.xpose.msra.mxu0 0.0
        %1119 = vmatprep.subr.mxu0 0.0
        %1120 = vmatpush1.xpose.msra.mxu0 0.0
        %1121 = vmatprep.subr.mxu0 0.0
        %1122 = vmatpush1.xpose.msra.mxu0 0.0
        %1123 = vmatprep.subr.mxu0 0.0
        %1124 = vmatpush1.xpose.msra.mxu0 0.0
        %1125 = vmatprep.subr.mxu0 0.0
        %1126 = vmatpush1.xpose.msra.mxu0 0.0
        %1127 = vmatprep.subr.mxu0 0.0
        %1128 = vmatpush1.xpose.msra.mxu0 0.0
        %1129 = vmatprep.subr.mxu0 0.0
        %1130 = vmatpush1.xpose.msra.mxu0 0.0
        %1131 = vmatprep.subr.mxu0 0.0
        %1132 = vmatpush1.xpose.msra.mxu0 0.0
        %1133 = vmatprep.subr.mxu0 0.0
        %1134 = vmatpush1.xpose.msra.mxu0 0.0
        %1135 = vmatprep.subr.mxu0 0.0
        %1136 = vmatpush1.xpose.msra.mxu0 0.0
        %1137 = vmatprep.subr.mxu0 0.0
        %1138 = vmatpush1.xpose.msra.mxu0 0.0
        %1139 = vmatprep.subr.mxu0 0.0
        %1140 = vmatpush1.xpose.msra.mxu0 0.0
        %1141 = vmatprep.subr.mxu0 0.0
        %1142 = vmatpush1.xpose.msra.mxu0 %v1115
        %1143 = vmatprep.subr.mxu0 0.0
        %1144 = vmatpush1.xpose.msra.mxu0 %v1112
        %1145 = vmatprep.subr.mxu0 0.0
        %1146 = vmatpush1.xpose.msra.mxu0 %v1109
        %1147 = vmatprep.subr.mxu0 0.0
        %1148 = vmatpush1.xpose.msra.mxu0 %v1106
        %1149 = vmatprep.subr.mxu0 0.0
        %1150 = vmatpush2.xpose.msra.mxu0 0.0
        %1151 = vmatprep.subr.mxu0 0.0
        %1152 = vmatpush2.xpose.msra.mxu0 0.0
        %1153 = vmatprep.subr.mxu0 0.0
        %1154 = vmatpush2.xpose.msra.mxu0 0.0
        %1155 = vmatprep.subr.mxu0 0.0
        %1156 = vmatpush2.xpose.msra.mxu0 0.0
        %1157 = vmatprep.subr.mxu0 0.0
        %1158 = vmatpush2.xpose.msra.mxu0 0.0
        %1159 = vmatprep.subr.mxu0 0.0
        %1160 = vmatpush2.xpose.msra.mxu0 0.0
        %1161 = vmatprep.subr.mxu0 0.0
        %1162 = vmatpush2.xpose.msra.mxu0 0.0
        %1163 = vmatprep.subr.mxu0 0.0
        %1164 = vmatpush2.xpose.msra.mxu0 0.0
        %1165 = vmatprep.subr.mxu0 0.0
        %1166 = vmatpush2.xpose.msra.mxu0 0.0
        %1167 = vmatprep.subr.mxu0 0.0
        %1168 = vmatpush2.xpose.msra.mxu0 0.0
        %1169 = vmatprep.subr.mxu0 0.0
        %1170 = vmatpush2.xpose.msra.mxu0 0.0
        %1171 = vmatprep.subr.mxu0 0.0
        %1172 = vmatpush2.xpose.msra.mxu0 0.0
        %1173 = vmatprep.subr.mxu0 0.0
        %1174 = vmatpush2.xpose.msra.mxu0 0.0
        %1175 = vmatprep.subr.mxu0 0.0
        %1176 = vmatpush2.xpose.msra.mxu0 0.0
        %1177 = vmatprep.subr.mxu0 0.0
        %1178 = vmatpush2.xpose.msra.mxu0 0.0
        %1179 = vmatprep.subr.mxu0 0.0
        %1180 = vmatpush2.xpose.msra.mxu0 0.0
        %1181 = vmatprep.mubr.f32.mxu0 0.0
        %1182 = vmatmul.mubr.f32.gmra.mxu0 %v611
        %v1183 = vpop.f32.mrf.mxu0
        %v1184 = vadd.f32 0.0, %v1183
        %v1185 = vpop.f32.mrf.mxu0
        %1186 = vdwg.mxu0
        %v1188 = vsel %vm609, %v576, 0
        %v1191 = vsel %vm609, %v577, 0
        %v1194 = vsel %vm609, %v578, 0
        %v1197 = vsel %vm609, %v579, 0
        %1199 = vmatprep.subr.mxu0 0.0
        %1200 = vmatpush1.xpose.msra.mxu0 0.0
        %1201 = vmatprep.subr.mxu0 0.0
        %1202 = vmatpush1.xpose.msra.mxu0 0.0
        %1203 = vmatprep.subr.mxu0 0.0
        %1204 = vmatpush1.xpose.msra.mxu0 0.0
        %1205 = vmatprep.subr.mxu0 0.0
        %1206 = vmatpush1.xpose.msra.mxu0 0.0
        %1207 = vmatprep.subr.mxu0 0.0
        %1208 = vmatpush1.xpose.msra.mxu0 0.0
        %1209 = vmatprep.subr.mxu0 0.0
        %1210 = vmatpush1.xpose.msra.mxu0 0.0
        %1211 = vmatprep.subr.mxu0 0.0
        %1212 = vmatpush1.xpose.msra.mxu0 0.0
        %1213 = vmatprep.subr.mxu0 0.0
        %1214 = vmatpush1.xpose.msra.mxu0 0.0
        %1215 = vmatprep.subr.mxu0 0.0
        %1216 = vmatpush1.xpose.msra.mxu0 0.0
        %1217 = vmatprep.subr.mxu0 0.0
        %1218 = vmatpush1.xpose.msra.mxu0 0.0
        %1219 = vmatprep.subr.mxu0 0.0
        %1220 = vmatpush1.xpose.msra.mxu0 0.0
        %1221 = vmatprep.subr.mxu0 0.0
        %1222 = vmatpush1.xpose.msra.mxu0 0.0
        %1223 = vmatprep.subr.mxu0 0.0
        %1224 = vmatpush1.xpose.msra.mxu0 %v1197
        %1225 = vmatprep.subr.mxu0 0.0
        %1226 = vmatpush1.xpose.msra.mxu0 %v1194
        %1227 = vmatprep.subr.mxu0 0.0
        %1228 = vmatpush1.xpose.msra.mxu0 %v1191
        %1229 = vmatprep.subr.mxu0 0.0
        %1230 = vmatpush1.xpose.msra.mxu0 %v1188
        %1231 = vmatprep.subr.mxu0 0.0
        %1232 = vmatpush2.xpose.msra.mxu0 0.0
        %1233 = vmatprep.subr.mxu0 0.0
        %1234 = vmatpush2.xpose.msra.mxu0 0.0
        %1235 = vmatprep.subr.mxu0 0.0
        %1236 = vmatpush2.xpose.msra.mxu0 0.0
        %1237 = vmatprep.subr.mxu0 0.0
        %1238 = vmatpush2.xpose.msra.mxu0 0.0
        %1239 = vmatprep.subr.mxu0 0.0
        %1240 = vmatpush2.xpose.msra.mxu0 0.0
        %1241 = vmatprep.subr.mxu0 0.0
        %1242 = vmatpush2.xpose.msra.mxu0 0.0
        %1243 = vmatprep.subr.mxu0 0.0
        %1244 = vmatpush2.xpose.msra.mxu0 0.0
        %1245 = vmatprep.subr.mxu0 0.0
        %1246 = vmatpush2.xpose.msra.mxu0 0.0
        %1247 = vmatprep.subr.mxu0 0.0
        %1248 = vmatpush2.xpose.msra.mxu0 0.0
        %1249 = vmatprep.subr.mxu0 0.0
        %1250 = vmatpush2.xpose.msra.mxu0 0.0
        %1251 = vmatprep.subr.mxu0 0.0
        %1252 = vmatpush2.xpose.msra.mxu0 0.0
        %1253 = vmatprep.subr.mxu0 0.0
        %1254 = vmatpush2.xpose.msra.mxu0 0.0
        %1255 = vmatprep.subr.mxu0 0.0
        %1256 = vmatpush2.xpose.msra.mxu0 0.0
        %1257 = vmatprep.subr.mxu0 0.0
        %1258 = vmatpush2.xpose.msra.mxu0 0.0
        %1259 = vmatprep.subr.mxu0 0.0
        %1260 = vmatpush2.xpose.msra.mxu0 0.0
        %1261 = vmatprep.subr.mxu0 0.0
        %1262 = vmatpush2.xpose.msra.mxu0 0.0
        %1263 = vmatprep.mubr.f32.mxu0 0.0
        %1264 = vmatmul.mubr.f32.gmra.mxu0 %v611
        %v1265 = vpop.f32.mrf.mxu0
        %v1266 = vadd.f32 0.0, %v1265
        %v1267 = vpop.f32.mrf.mxu0
        %1268 = vdwg.mxu0
        %v1270 = vsel %vm609, %v580, 0
        %v1273 = vsel %vm609, %v581, 0
        %v1276 = vsel %vm609, %v582, 0
        %v1279 = vsel %vm609, %v583, 0
        %1281 = vmatprep.subr.mxu0 0.0
        %1282 = vmatpush1.xpose.msra.mxu0 0.0
        %1283 = vmatprep.subr.mxu0 0.0
        %1284 = vmatpush1.xpose.msra.mxu0 0.0
        %1285 = vmatprep.subr.mxu0 0.0
        %1286 = vmatpush1.xpose.msra.mxu0 0.0
        %1287 = vmatprep.subr.mxu0 0.0
        %1288 = vmatpush1.xpose.msra.mxu0 0.0
        %1289 = vmatprep.subr.mxu0 0.0
        %1290 = vmatpush1.xpose.msra.mxu0 0.0
        %1291 = vmatprep.subr.mxu0 0.0
        %1292 = vmatpush1.xpose.msra.mxu0 0.0
        %1293 = vmatprep.subr.mxu0 0.0
        %1294 = vmatpush1.xpose.msra.mxu0 0.0
        %1295 = vmatprep.subr.mxu0 0.0
        %1296 = vmatpush1.xpose.msra.mxu0 0.0
        %1297 = vmatprep.subr.mxu0 0.0
        %1298 = vmatpush1.xpose.msra.mxu0 0.0
        %1299 = vmatprep.subr.mxu0 0.0
        %1300 = vmatpush1.xpose.msra.mxu0 0.0
        %1301 = vmatprep.subr.mxu0 0.0
        %1302 = vmatpush1.xpose.msra.mxu0 0.0
        %1303 = vmatprep.subr.mxu0 0.0
        %1304 = vmatpush1.xpose.msra.mxu0 0.0
        %1305 = vmatprep.subr.mxu0 0.0
        %1306 = vmatpush1.xpose.msra.mxu0 %v1279
        %1307 = vmatprep.subr.mxu0 0.0
        %1308 = vmatpush1.xpose.msra.mxu0 %v1276
        %1309 = vmatprep.subr.mxu0 0.0
        %1310 = vmatpush1.xpose.msra.mxu0 %v1273
        %1311 = vmatprep.subr.mxu0 0.0
        %1312 = vmatpush1.xpose.msra.mxu0 %v1270
        %1313 = vmatprep.subr.mxu0 0.0
        %1314 = vmatpush2.xpose.msra.mxu0 0.0
        %1315 = vmatprep.subr.mxu0 0.0
        %1316 = vmatpush2.xpose.msra.mxu0 0.0
        %1317 = vmatprep.subr.mxu0 0.0
        %1318 = vmatpush2.xpose.msra.mxu0 0.0
        %1319 = vmatprep.subr.mxu0 0.0
        %1320 = vmatpush2.xpose.msra.mxu0 0.0
        %1321 = vmatprep.subr.mxu0 0.0
        %1322 = vmatpush2.xpose.msra.mxu0 0.0
        %1323 = vmatprep.subr.mxu0 0.0
        %1324 = vmatpush2.xpose.msra.mxu0 0.0
        %1325 = vmatprep.subr.mxu0 0.0
        %1326 = vmatpush2.xpose.msra.mxu0 0.0
        %1327 = vmatprep.subr.mxu0 0.0
        %1328 = vmatpush2.xpose.msra.mxu0 0.0
        %1329 = vmatprep.subr.mxu0 0.0
        %1330 = vmatpush2.xpose.msra.mxu0 0.0
        %1331 = vmatprep.subr.mxu0 0.0
        %1332 = vmatpush2.xpose.msra.mxu0 0.0
        %1333 = vmatprep.subr.mxu0 0.0
        %1334 = vmatpush2.xpose.msra.mxu0 0.0
        %1335 = vmatprep.subr.mxu0 0.0
        %1336 = vmatpush2.xpose.msra.mxu0 0.0
        %1337 = vmatprep.subr.mxu0 0.0
        %1338 = vmatpush2.xpose.msra.mxu0 0.0
        %1339 = vmatprep.subr.mxu0 0.0
        %1340 = vmatpush2.xpose.msra.mxu0 0.0
        %1341 = vmatprep.subr.mxu0 0.0
        %1342 = vmatpush2.xpose.msra.mxu0 0.0
        %1343 = vmatprep.subr.mxu0 0.0
        %1344 = vmatpush2.xpose.msra.mxu0 0.0
        %1345 = vmatprep.mubr.f32.mxu0 0.0
        %1346 = vmatmul.mubr.f32.gmra.mxu0 %v611
        %v1347 = vpop.f32.mrf.mxu0
        %v1348 = vadd.f32 0.0, %v1347
        %v1349 = vpop.f32.mrf.mxu0
        %1350 = vdwg.mxu0
        %v1351 = vmul.f32 %v774, 0.1
        %v1352 = vmul.f32 %v856, 0.1
        %v1353 = vmul.f32 %v938, 0.1
        %v1354 = vmul.f32 %v1020, 0.1
        %v1355 = vmul.f32 %v1102, 0.1
        %v1356 = vmul.f32 %v1184, 0.1
        %v1357 = vmul.f32 %v1266, 0.1
        %v1358 = vmul.f32 %v1348, 0.1
        %v1359 = vadd.f32 %v692, %v1351
        %v1360 = vadd.f32 %v692, %v1352
        %v1361 = vadd.f32 %v692, %v1353
        %v1362 = vadd.f32 %v692, %v1354
        %v1363 = vadd.f32 %v692, %v1355
        %v1364 = vadd.f32 %v692, %v1356
        %v1365 = vadd.f32 %v692, %v1357
        %v1366 = vadd.f32 %v692, %v1358
        %v1375 = vlaneseq
        %v1376 = vshrl.u32 %v1375, 7
        %v1377 = vsub.s32 0, %v1376
        %v1378 = vrot.slane %v601, %v1377
        %v1379 = vlaneseq
        %v1380 = vshrl.u32 %v1379, 7
        %v1381 = vsub.s32 0, %v1380
        %v1382 = vrot.slane %v602, %v1381
        %v1383 = vlaneseq
        %v1384 = vshrl.u32 %v1383, 7
        %v1385 = vsub.s32 0, %v1384
        %v1386 = vrot.slane %v603, %v1385
        %v1387 = vlaneseq
        %v1388 = vshrl.u32 %v1387, 7
        %v1389 = vsub.s32 0, %v1388
        %v1390 = vrot.slane %v604, %v1389
        %v1391 = vlaneseq
        %v1392 = vshrl.u32 %v1391, 7
        %v1393 = vsub.s32 0, %v1392
        %v1394 = vrot.slane %v605, %v1393
        %v1395 = vlaneseq
        %v1396 = vshrl.u32 %v1395, 7
        %v1397 = vsub.s32 0, %v1396
        %v1398 = vrot.slane %v606, %v1397
        %v1399 = vlaneseq
        %v1400 = vshrl.u32 %v1399, 7
        %v1401 = vsub.s32 0, %v1400
        %v1402 = vrot.slane %v607, %v1401
        %v1403 = vlaneseq
        %v1404 = vshrl.u32 %v1403, 7
        %v1405 = vsub.s32 0, %v1404
        %v1406 = vrot.slane %v608, %v1405
        %v1415 = vadd.f32 %v1359, %v1378
        %v1416 = vadd.f32 %v1360, %v1382
        %v1417 = vadd.f32 %v1361, %v1386
        %v1418 = vadd.f32 %v1362, %v1390
        %v1419 = vadd.f32 %v1363, %v1394
        %v1420 = vadd.f32 %v1364, %v1398
        %v1421 = vadd.f32 %v1365, %v1402
        %v1422 = vadd.f32 %v1366, %v1406
        %v1423 = vmax.f32 %v1415, 0.0
        %v1424 = vmax.f32 %v1416, 0.0
        %v1425 = vmax.f32 %v1417, 0.0
        %v1426 = vmax.f32 %v1418, 0.0
        %v1427 = vmax.f32 %v1419, 0.0
        %v1428 = vmax.f32 %v1420, 0.0
        %v1429 = vmax.f32 %v1421, 0.0
        %v1430 = vmax.f32 %v1422, 0.0
        %v1431 = vld [vmem:[%s5] sm:$0xff]
        %v1432 = vld [vmem:[%s5 + $0x8] sm:$0xff]
        %v1433 = vld [vmem:[%s5 + $0x10] sm:$0xff]
        %v1434 = vld [vmem:[%s5 + $0x18] sm:$0xff]
        %v1435 = vld [vmem:[%s530] sm:$0xff]
        %v1436 = vld [vmem:[%s530 + $0x8] sm:$0xff]
        %v1437 = vld [vmem:[%s530 + $0x10] sm:$0xff]
        %v1438 = vld [vmem:[%s530 + $0x18] sm:$0xff]
        %v1439 = vld [vmem:[%s530 + $0x20] sm:$0xff]
        %v1440 = vld [vmem:[%s530 + $0x28] sm:$0xff]
        %v1441 = vld [vmem:[%s530 + $0x30] sm:$0xff]
        %v1442 = vld [vmem:[%s530 + $0x38] sm:$0xff]
        %v1443 = vld [vmem:[%s530 + $0x40] sm:$0xff]
        %v1444 = vld [vmem:[%s530 + $0x48] sm:$0xff]
        %v1445 = vld [vmem:[%s530 + $0x50] sm:$0xff]
        %v1446 = vld [vmem:[%s530 + $0x58] sm:$0xff]
        %v1447 = vld [vmem:[%s530 + $0x60] sm:$0xff]
        %v1448 = vld [vmem:[%s530 + $0x68] sm:$0xff]
        %v1449 = vld [vmem:[%s530 + $0x70] sm:$0xff]
        %v1450 = vld [vmem:[%s530 + $0x78] sm:$0xff]
        %v1451 = vld [vmem:[%s530 + $0x80] sm:$0xff]
        %v1452 = vld [vmem:[%s530 + $0x88] sm:$0xff]
        %v1453 = vld [vmem:[%s530 + $0x90] sm:$0xff]
        %v1454 = vld [vmem:[%s530 + $0x98] sm:$0xff]
        %v1455 = vld [vmem:[%s530 + $0xa0] sm:$0xff]
        %v1456 = vld [vmem:[%s530 + $0xa8] sm:$0xff]
        %v1457 = vld [vmem:[%s530 + $0xb0] sm:$0xff]
        %v1458 = vld [vmem:[%s530 + $0xb8] sm:$0xff]
        %v1459 = vld [vmem:[%s530 + $0xc0] sm:$0xff]
        %v1460 = vld [vmem:[%s530 + $0xc8] sm:$0xff]
        %v1461 = vld [vmem:[%s530 + $0xd0] sm:$0xff]
        %v1462 = vld [vmem:[%s530 + $0xd8] sm:$0xff]
        %v1463 = vld [vmem:[%s530 + $0xe0] sm:$0xff]
        %v1464 = vld [vmem:[%s530 + $0xe8] sm:$0xff]
        %v1465 = vld [vmem:[%s530 + $0xf0] sm:$0xff]
        %v1466 = vld [vmem:[%s530 + $0xf8] sm:$0xff]
        %v1467 = vld [vmem:[%s7] sm:$0x1]
        %v1468 = vld [vmem:[%s535] sm:$0x1]
        %v1469 = vld [vmem:[%s535 + $0x1] sm:$0x1]
        %v1470 = vld [vmem:[%s535 + $0x2] sm:$0x1]
        %v1471 = vld [vmem:[%s535 + $0x3] sm:$0x1]
        %v1472 = vld [vmem:[%s535 + $0x4] sm:$0x1]
        %v1473 = vld [vmem:[%s535 + $0x5] sm:$0x1]
        %v1474 = vld [vmem:[%s535 + $0x6] sm:$0x1]
        %v1475 = vld [vmem:[%s535 + $0x7] sm:$0x1]
        %v1476 = vmul.f32 %v1468, 0.1
        %v1477 = vmul.f32 %v1469, 0.1
        %v1478 = vmul.f32 %v1470, 0.1
        %v1479 = vmul.f32 %v1471, 0.1
        %v1480 = vmul.f32 %v1472, 0.1
        %v1481 = vmul.f32 %v1473, 0.1
        %v1482 = vmul.f32 %v1474, 0.1
        %v1483 = vmul.f32 %v1475, 0.1
        %v1484 = vadd.f32 %v1467, %v1476
        %v1485 = vadd.f32 %v1467, %v1477
        %v1486 = vadd.f32 %v1467, %v1478
        %v1487 = vadd.f32 %v1467, %v1479
        %v1488 = vadd.f32 %v1467, %v1480
        %v1489 = vadd.f32 %v1467, %v1481
        %v1490 = vadd.f32 %v1467, %v1482
        %v1491 = vadd.f32 %v1467, %v1483
        %v1500 = vcombine.low %v1423, %v1424
        %v1501 = vcombine.low %v1425, %v1426
        %v1502 = vcombine.low %v1427, %v1428
        %v1503 = vcombine.low %v1429, %v1430
        %vm1504 = vcmask 261120
        %v1505 = vsel %vm1504, %v1500, 0
        %v1507 = vsel %vm1504, %v1501, 0
        %v1509 = vsel %vm1504, %v1502, 0
        %v1511 = vsel %vm1504, %v1503, 0
        %v1514 = vsel %vm1504, %v1431, 0
        %v1517 = vsel %vm1504, %v1432, 0
        %v1520 = vsel %vm1504, %v1433, 0
        %v1523 = vsel %vm1504, %v1434, 0
        %1525 = vmatprep.subr.mxu0 0.0
        %1526 = vmatpush1.xpose.msra.mxu0 0.0
        %1527 = vmatprep.subr.mxu0 0.0
        %1528 = vmatpush1.xpose.msra.mxu0 0.0
        %1529 = vmatprep.subr.mxu0 0.0
        %1530 = vmatpush1.xpose.msra.mxu0 0.0
        %1531 = vmatprep.subr.mxu0 0.0
        %1532 = vmatpush1.xpose.msra.mxu0 0.0
        %1533 = vmatprep.subr.mxu0 0.0
        %1534 = vmatpush1.xpose.msra.mxu0 0.0
        %1535 = vmatprep.subr.mxu0 0.0
        %1536 = vmatpush1.xpose.msra.mxu0 0.0
        %1537 = vmatprep.subr.mxu0 0.0
        %1538 = vmatpush1.xpose.msra.mxu0 0.0
        %1539 = vmatprep.subr.mxu0 0.0
        %1540 = vmatpush1.xpose.msra.mxu0 0.0
        %1541 = vmatprep.subr.mxu0 0.0
        %1542 = vmatpush1.xpose.msra.mxu0 0.0
        %1543 = vmatprep.subr.mxu0 0.0
        %1544 = vmatpush1.xpose.msra.mxu0 0.0
        %1545 = vmatprep.subr.mxu0 0.0
        %1546 = vmatpush1.xpose.msra.mxu0 0.0
        %1547 = vmatprep.subr.mxu0 0.0
        %1548 = vmatpush1.xpose.msra.mxu0 0.0
        %1549 = vmatprep.subr.mxu0 0.0
        %1550 = vmatpush1.xpose.msra.mxu0 %v1523
        %1551 = vmatprep.subr.mxu0 0.0
        %1552 = vmatpush1.xpose.msra.mxu0 %v1520
        %1553 = vmatprep.subr.mxu0 0.0
        %1554 = vmatpush1.xpose.msra.mxu0 %v1517
        %1555 = vmatprep.subr.mxu0 0.0
        %1556 = vmatpush1.xpose.msra.mxu0 %v1514
        %1557 = vmatprep.subr.mxu0 0.0
        %1558 = vmatpush2.xpose.msra.mxu0 0.0
        %1559 = vmatprep.subr.mxu0 0.0
        %1560 = vmatpush2.xpose.msra.mxu0 0.0
        %1561 = vmatprep.subr.mxu0 0.0
        %1562 = vmatpush2.xpose.msra.mxu0 0.0
        %1563 = vmatprep.subr.mxu0 0.0
        %1564 = vmatpush2.xpose.msra.mxu0 0.0
        %1565 = vmatprep.subr.mxu0 0.0
        %1566 = vmatpush2.xpose.msra.mxu0 0.0
        %1567 = vmatprep.subr.mxu0 0.0
        %1568 = vmatpush2.xpose.msra.mxu0 0.0
        %1569 = vmatprep.subr.mxu0 0.0
        %1570 = vmatpush2.xpose.msra.mxu0 0.0
        %1571 = vmatprep.subr.mxu0 0.0
        %1572 = vmatpush2.xpose.msra.mxu0 0.0
        %1573 = vmatprep.subr.mxu0 0.0
        %1574 = vmatpush2.xpose.msra.mxu0 0.0
        %1575 = vmatprep.subr.mxu0 0.0
        %1576 = vmatpush2.xpose.msra.mxu0 0.0
        %1577 = vmatprep.subr.mxu0 0.0
        %1578 = vmatpush2.xpose.msra.mxu0 0.0
        %1579 = vmatprep.subr.mxu0 0.0
        %1580 = vmatpush2.xpose.msra.mxu0 0.0
        %1581 = vmatprep.subr.mxu0 0.0
        %1582 = vmatpush2.xpose.msra.mxu0 0.0
        %1583 = vmatprep.subr.mxu0 0.0
        %1584 = vmatpush2.xpose.msra.mxu0 0.0
        %1585 = vmatprep.subr.mxu0 0.0
        %1586 = vmatpush2.xpose.msra.mxu0 0.0
        %1587 = vmatprep.subr.mxu0 0.0
        %1588 = vmatpush2.xpose.msra.mxu0 0.0
        %1589 = vmatprep.mubr.f32.mxu0 0.0
        %1590 = vmatmul.mubr.f32.gmra.mxu0 %v1505
        %v1591 = vpop.f32.mrf.mxu0
        %v1592 = vadd.f32 0.0, %v1591
        %v1593 = vpop.f32.mrf.mxu0
        %1594 = vmatprep.mubr.f32.mxu0 0.0
        %1595 = vmatmul.mubr.f32.gmra.mxu0 %v1507
        %v1596 = vpop.f32.mrf.mxu0
        %v1597 = vadd.f32 0.0, %v1596
        %v1598 = vpop.f32.mrf.mxu0
        %1599 = vmatprep.mubr.f32.mxu0 0.0
        %1600 = vmatmul.mubr.f32.gmra.mxu0 %v1509
        %v1601 = vpop.f32.mrf.mxu0
        %v1602 = vadd.f32 0.0, %v1601
        %v1603 = vpop.f32.mrf.mxu0
        %1604 = vmatprep.mubr.f32.mxu0 0.0
        %1605 = vmatmul.mubr.f32.gmra.mxu0 %v1511
        %v1606 = vpop.f32.mrf.mxu0
        %v1607 = vadd.f32 0.0, %v1606
        %v1608 = vpop.f32.mrf.mxu0
        %1609 = vdwg.mxu0
        %v1614 = vcombine.high %v1592, %v1592
        %v1615 = vcombine.high %v1597, %v1597
        %v1616 = vcombine.high %v1602, %v1602
        %v1617 = vcombine.high %v1607, %v1607
        %v1622 = vsel %vm1504, %v1423, 0
        %v1625 = vsel %vm1504, %v1435, 0
        %v1628 = vsel %vm1504, %v1436, 0
        %v1631 = vsel %vm1504, %v1437, 0
        %v1634 = vsel %vm1504, %v1438, 0
        %1636 = vmatprep.subr.mxu0 0.0
        %1637 = vmatpush1.xpose.msra.mxu0 0.0
        %1638 = vmatprep.subr.mxu0 0.0
        %1639 = vmatpush1.xpose.msra.mxu0 0.0
        %1640 = vmatprep.subr.mxu0 0.0
        %1641 = vmatpush1.xpose.msra.mxu0 0.0
        %1642 = vmatprep.subr.mxu0 0.0
        %1643 = vmatpush1.xpose.msra.mxu0 0.0
        %1644 = vmatprep.subr.mxu0 0.0
        %1645 = vmatpush1.xpose.msra.mxu0 0.0
        %1646 = vmatprep.subr.mxu0 0.0
        %1647 = vmatpush1.xpose.msra.mxu0 0.0
        %1648 = vmatprep.subr.mxu0 0.0
        %1649 = vmatpush1.xpose.msra.mxu0 0.0
        %1650 = vmatprep.subr.mxu0 0.0
        %1651 = vmatpush1.xpose.msra.mxu0 0.0
        %1652 = vmatprep.subr.mxu0 0.0
        %1653 = vmatpush1.xpose.msra.mxu0 0.0
        %1654 = vmatprep.subr.mxu0 0.0
        %1655 = vmatpush1.xpose.msra.mxu0 0.0
        %1656 = vmatprep.subr.mxu0 0.0
        %1657 = vmatpush1.xpose.msra.mxu0 0.0
        %1658 = vmatprep.subr.mxu0 0.0
        %1659 = vmatpush1.xpose.msra.mxu0 0.0
        %1660 = vmatprep.subr.mxu0 0.0
        %1661 = vmatpush1.xpose.msra.mxu0 %v1634
        %1662 = vmatprep.subr.mxu0 0.0
        %1663 = vmatpush1.xpose.msra.mxu0 %v1631
        %1664 = vmatprep.subr.mxu0 0.0
        %1665 = vmatpush1.xpose.msra.mxu0 %v1628
        %1666 = vmatprep.subr.mxu0 0.0
        %1667 = vmatpush1.xpose.msra.mxu0 %v1625
        %1668 = vmatprep.subr.mxu0 0.0
        %1669 = vmatpush2.xpose.msra.mxu0 0.0
        %1670 = vmatprep.subr.mxu0 0.0
        %1671 = vmatpush2.xpose.msra.mxu0 0.0
        %1672 = vmatprep.subr.mxu0 0.0
        %1673 = vmatpush2.xpose.msra.mxu0 0.0
        %1674 = vmatprep.subr.mxu0 0.0
        %1675 = vmatpush2.xpose.msra.mxu0 0.0
        %1676 = vmatprep.subr.mxu0 0.0
        %1677 = vmatpush2.xpose.msra.mxu0 0.0
        %1678 = vmatprep.subr.mxu0 0.0
        %1679 = vmatpush2.xpose.msra.mxu0 0.0
        %1680 = vmatprep.subr.mxu0 0.0
        %1681 = vmatpush2.xpose.msra.mxu0 0.0
        %1682 = vmatprep.subr.mxu0 0.0
        %1683 = vmatpush2.xpose.msra.mxu0 0.0
        %1684 = vmatprep.subr.mxu0 0.0
        %1685 = vmatpush2.xpose.msra.mxu0 0.0
        %1686 = vmatprep.subr.mxu0 0.0
        %1687 = vmatpush2.xpose.msra.mxu0 0.0
        %1688 = vmatprep.subr.mxu0 0.0
        %1689 = vmatpush2.xpose.msra.mxu0 0.0
        %1690 = vmatprep.subr.mxu0 0.0
        %1691 = vmatpush2.xpose.msra.mxu0 0.0
        %1692 = vmatprep.subr.mxu0 0.0
        %1693 = vmatpush2.xpose.msra.mxu0 0.0
        %1694 = vmatprep.subr.mxu0 0.0
        %1695 = vmatpush2.xpose.msra.mxu0 0.0
        %1696 = vmatprep.subr.mxu0 0.0
        %1697 = vmatpush2.xpose.msra.mxu0 0.0
        %1698 = vmatprep.subr.mxu0 0.0
        %1699 = vmatpush2.xpose.msra.mxu0 0.0
        %1700 = vmatprep.mubr.f32.mxu0 0.0
        %1701 = vmatmul.mubr.f32.gmra.mxu0 %v1622
        %v1702 = vpop.f32.mrf.mxu0
        %v1703 = vadd.f32 0.0, %v1702
        %v1704 = vpop.f32.mrf.mxu0
        %1705 = vdwg.mxu0
        %v1706 = vsel %vm1504, %v1424, 0
        %v1709 = vsel %vm1504, %v1439, 0
        %v1712 = vsel %vm1504, %v1440, 0
        %v1715 = vsel %vm1504, %v1441, 0
        %v1718 = vsel %vm1504, %v1442, 0
        %1720 = vmatprep.subr.mxu0 0.0
        %1721 = vmatpush1.xpose.msra.mxu0 0.0
        %1722 = vmatprep.subr.mxu0 0.0
        %1723 = vmatpush1.xpose.msra.mxu0 0.0
        %1724 = vmatprep.subr.mxu0 0.0
        %1725 = vmatpush1.xpose.msra.mxu0 0.0
        %1726 = vmatprep.subr.mxu0 0.0
        %1727 = vmatpush1.xpose.msra.mxu0 0.0
        %1728 = vmatprep.subr.mxu0 0.0
        %1729 = vmatpush1.xpose.msra.mxu0 0.0
        %1730 = vmatprep.subr.mxu0 0.0
        %1731 = vmatpush1.xpose.msra.mxu0 0.0
        %1732 = vmatprep.subr.mxu0 0.0
        %1733 = vmatpush1.xpose.msra.mxu0 0.0
        %1734 = vmatprep.subr.mxu0 0.0
        %1735 = vmatpush1.xpose.msra.mxu0 0.0
        %1736 = vmatprep.subr.mxu0 0.0
        %1737 = vmatpush1.xpose.msra.mxu0 0.0
        %1738 = vmatprep.subr.mxu0 0.0
        %1739 = vmatpush1.xpose.msra.mxu0 0.0
        %1740 = vmatprep.subr.mxu0 0.0
        %1741 = vmatpush1.xpose.msra.mxu0 0.0
        %1742 = vmatprep.subr.mxu0 0.0
        %1743 = vmatpush1.xpose.msra.mxu0 0.0
        %1744 = vmatprep.subr.mxu0 0.0
        %1745 = vmatpush1.xpose.msra.mxu0 %v1718
        %1746 = vmatprep.subr.mxu0 0.0
        %1747 = vmatpush1.xpose.msra.mxu0 %v1715
        %1748 = vmatprep.subr.mxu0 0.0
        %1749 = vmatpush1.xpose.msra.mxu0 %v1712
        %1750 = vmatprep.subr.mxu0 0.0
        %1751 = vmatpush1.xpose.msra.mxu0 %v1709
        %1752 = vmatprep.subr.mxu0 0.0
        %1753 = vmatpush2.xpose.msra.mxu0 0.0
        %1754 = vmatprep.subr.mxu0 0.0
        %1755 = vmatpush2.xpose.msra.mxu0 0.0
        %1756 = vmatprep.subr.mxu0 0.0
        %1757 = vmatpush2.xpose.msra.mxu0 0.0
        %1758 = vmatprep.subr.mxu0 0.0
        %1759 = vmatpush2.xpose.msra.mxu0 0.0
        %1760 = vmatprep.subr.mxu0 0.0
        %1761 = vmatpush2.xpose.msra.mxu0 0.0
        %1762 = vmatprep.subr.mxu0 0.0
        %1763 = vmatpush2.xpose.msra.mxu0 0.0
        %1764 = vmatprep.subr.mxu0 0.0
        %1765 = vmatpush2.xpose.msra.mxu0 0.0
        %1766 = vmatprep.subr.mxu0 0.0
        %1767 = vmatpush2.xpose.msra.mxu0 0.0
        %1768 = vmatprep.subr.mxu0 0.0
        %1769 = vmatpush2.xpose.msra.mxu0 0.0
        %1770 = vmatprep.subr.mxu0 0.0
        %1771 = vmatpush2.xpose.msra.mxu0 0.0
        %1772 = vmatprep.subr.mxu0 0.0
        %1773 = vmatpush2.xpose.msra.mxu0 0.0
        %1774 = vmatprep.subr.mxu0 0.0
        %1775 = vmatpush2.xpose.msra.mxu0 0.0
        %1776 = vmatprep.subr.mxu0 0.0
        %1777 = vmatpush2.xpose.msra.mxu0 0.0
        %1778 = vmatprep.subr.mxu0 0.0
        %1779 = vmatpush2.xpose.msra.mxu0 0.0
        %1780 = vmatprep.subr.mxu0 0.0
        %1781 = vmatpush2.xpose.msra.mxu0 0.0
        %1782 = vmatprep.subr.mxu0 0.0
        %1783 = vmatpush2.xpose.msra.mxu0 0.0
        %1784 = vmatprep.mubr.f32.mxu0 0.0
        %1785 = vmatmul.mubr.f32.gmra.mxu0 %v1706
        %v1786 = vpop.f32.mrf.mxu0
        %v1787 = vadd.f32 0.0, %v1786
        %v1788 = vpop.f32.mrf.mxu0
        %1789 = vdwg.mxu0
        %v1790 = vsel %vm1504, %v1425, 0
        %v1793 = vsel %vm1504, %v1443, 0
        %v1796 = vsel %vm1504, %v1444, 0
        %v1799 = vsel %vm1504, %v1445, 0
        %v1802 = vsel %vm1504, %v1446, 0
        %1804 = vmatprep.subr.mxu0 0.0
        %1805 = vmatpush1.xpose.msra.mxu0 0.0
        %1806 = vmatprep.subr.mxu0 0.0
        %1807 = vmatpush1.xpose.msra.mxu0 0.0
        %1808 = vmatprep.subr.mxu0 0.0
        %1809 = vmatpush1.xpose.msra.mxu0 0.0
        %1810 = vmatprep.subr.mxu0 0.0
        %1811 = vmatpush1.xpose.msra.mxu0 0.0
        %1812 = vmatprep.subr.mxu0 0.0
        %1813 = vmatpush1.xpose.msra.mxu0 0.0
        %1814 = vmatprep.subr.mxu0 0.0
        %1815 = vmatpush1.xpose.msra.mxu0 0.0
        %1816 = vmatprep.subr.mxu0 0.0
        %1817 = vmatpush1.xpose.msra.mxu0 0.0
        %1818 = vmatprep.subr.mxu0 0.0
        %1819 = vmatpush1.xpose.msra.mxu0 0.0
        %1820 = vmatprep.subr.mxu0 0.0
        %1821 = vmatpush1.xpose.msra.mxu0 0.0
        %1822 = vmatprep.subr.mxu0 0.0
        %1823 = vmatpush1.xpose.msra.mxu0 0.0
        %1824 = vmatprep.subr.mxu0 0.0
        %1825 = vmatpush1.xpose.msra.mxu0 0.0
        %1826 = vmatprep.subr.mxu0 0.0
        %1827 = vmatpush1.xpose.msra.mxu0 0.0
        %1828 = vmatprep.subr.mxu0 0.0
        %1829 = vmatpush1.xpose.msra.mxu0 %v1802
        %1830 = vmatprep.subr.mxu0 0.0
        %1831 = vmatpush1.xpose.msra.mxu0 %v1799
        %1832 = vmatprep.subr.mxu0 0.0
        %1833 = vmatpush1.xpose.msra.mxu0 %v1796
        %1834 = vmatprep.subr.mxu0 0.0
        %1835 = vmatpush1.xpose.msra.mxu0 %v1793
        %1836 = vmatprep.subr.mxu0 0.0
        %1837 = vmatpush2.xpose.msra.mxu0 0.0
        %1838 = vmatprep.subr.mxu0 0.0
        %1839 = vmatpush2.xpose.msra.mxu0 0.0
        %1840 = vmatprep.subr.mxu0 0.0
        %1841 = vmatpush2.xpose.msra.mxu0 0.0
        %1842 = vmatprep.subr.mxu0 0.0
        %1843 = vmatpush2.xpose.msra.mxu0 0.0
        %1844 = vmatprep.subr.mxu0 0.0
        %1845 = vmatpush2.xpose.msra.mxu0 0.0
        %1846 = vmatprep.subr.mxu0 0.0
        %1847 = vmatpush2.xpose.msra.mxu0 0.0
        %1848 = vmatprep.subr.mxu0 0.0
        %1849 = vmatpush2.xpose.msra.mxu0 0.0
        %1850 = vmatprep.subr.mxu0 0.0
        %1851 = vmatpush2.xpose.msra.mxu0 0.0
        %1852 = vmatprep.subr.mxu0 0.0
        %1853 = vmatpush2.xpose.msra.mxu0 0.0
        %1854 = vmatprep.subr.mxu0 0.0
        %1855 = vmatpush2.xpose.msra.mxu0 0.0
        %1856 = vmatprep.subr.mxu0 0.0
        %1857 = vmatpush2.xpose.msra.mxu0 0.0
        %1858 = vmatprep.subr.mxu0 0.0
        %1859 = vmatpush2.xpose.msra.mxu0 0.0
        %1860 = vmatprep.subr.mxu0 0.0
        %1861 = vmatpush2.xpose.msra.mxu0 0.0
        %1862 = vmatprep.subr.mxu0 0.0
        %1863 = vmatpush2.xpose.msra.mxu0 0.0
        %1864 = vmatprep.subr.mxu0 0.0
        %1865 = vmatpush2.xpose.msra.mxu0 0.0
        %1866 = vmatprep.subr.mxu0 0.0
        %1867 = vmatpush2.xpose.msra.mxu0 0.0
        %1868 = vmatprep.mubr.f32.mxu0 0.0
        %1869 = vmatmul.mubr.f32.gmra.mxu0 %v1790
        %v1870 = vpop.f32.mrf.mxu0
        %v1871 = vadd.f32 0.0, %v1870
        %v1872 = vpop.f32.mrf.mxu0
        %1873 = vdwg.mxu0
        %v1874 = vsel %vm1504, %v1426, 0
        %v1877 = vsel %vm1504, %v1447, 0
        %v1880 = vsel %vm1504, %v1448, 0
        %v1883 = vsel %vm1504, %v1449, 0
        %v1886 = vsel %vm1504, %v1450, 0
        %1888 = vmatprep.subr.mxu0 0.0
        %1889 = vmatpush1.xpose.msra.mxu0 0.0
        %1890 = vmatprep.subr.mxu0 0.0
        %1891 = vmatpush1.xpose.msra.mxu0 0.0
        %1892 = vmatprep.subr.mxu0 0.0
        %1893 = vmatpush1.xpose.msra.mxu0 0.0
        %1894 = vmatprep.subr.mxu0 0.0
        %1895 = vmatpush1.xpose.msra.mxu0 0.0
        %1896 = vmatprep.subr.mxu0 0.0
        %1897 = vmatpush1.xpose.msra.mxu0 0.0
        %1898 = vmatprep.subr.mxu0 0.0
        %1899 = vmatpush1.xpose.msra.mxu0 0.0
        %1900 = vmatprep.subr.mxu0 0.0
        %1901 = vmatpush1.xpose.msra.mxu0 0.0
        %1902 = vmatprep.subr.mxu0 0.0
        %1903 = vmatpush1.xpose.msra.mxu0 0.0
        %1904 = vmatprep.subr.mxu0 0.0
        %1905 = vmatpush1.xpose.msra.mxu0 0.0
        %1906 = vmatprep.subr.mxu0 0.0
        %1907 = vmatpush1.xpose.msra.mxu0 0.0
        %1908 = vmatprep.subr.mxu0 0.0
        %1909 = vmatpush1.xpose.msra.mxu0 0.0
        %1910 = vmatprep.subr.mxu0 0.0
        %1911 = vmatpush1.xpose.msra.mxu0 0.0
        %1912 = vmatprep.subr.mxu0 0.0
        %1913 = vmatpush1.xpose.msra.mxu0 %v1886
        %1914 = vmatprep.subr.mxu0 0.0
        %1915 = vmatpush1.xpose.msra.mxu0 %v1883
        %1916 = vmatprep.subr.mxu0 0.0
        %1917 = vmatpush1.xpose.msra.mxu0 %v1880
        %1918 = vmatprep.subr.mxu0 0.0
        %1919 = vmatpush1.xpose.msra.mxu0 %v1877
        %1920 = vmatprep.subr.mxu0 0.0
        %1921 = vmatpush2.xpose.msra.mxu0 0.0
        %1922 = vmatprep.subr.mxu0 0.0
        %1923 = vmatpush2.xpose.msra.mxu0 0.0
        %1924 = vmatprep.subr.mxu0 0.0
        %1925 = vmatpush2.xpose.msra.mxu0 0.0
        %1926 = vmatprep.subr.mxu0 0.0
        %1927 = vmatpush2.xpose.msra.mxu0 0.0
        %1928 = vmatprep.subr.mxu0 0.0
        %1929 = vmatpush2.xpose.msra.mxu0 0.0
        %1930 = vmatprep.subr.mxu0 0.0
        %1931 = vmatpush2.xpose.msra.mxu0 0.0
        %1932 = vmatprep.subr.mxu0 0.0
        %1933 = vmatpush2.xpose.msra.mxu0 0.0
        %1934 = vmatprep.subr.mxu0 0.0
        %1935 = vmatpush2.xpose.msra.mxu0 0.0
        %1936 = vmatprep.subr.mxu0 0.0
        %1937 = vmatpush2.xpose.msra.mxu0 0.0
        %1938 = vmatprep.subr.mxu0 0.0
        %1939 = vmatpush2.xpose.msra.mxu0 0.0
        %1940 = vmatprep.subr.mxu0 0.0
        %1941 = vmatpush2.xpose.msra.mxu0 0.0
        %1942 = vmatprep.subr.mxu0 0.0
        %1943 = vmatpush2.xpose.msra.mxu0 0.0
        %1944 = vmatprep.subr.mxu0 0.0
        %1945 = vmatpush2.xpose.msra.mxu0 0.0
        %1946 = vmatprep.subr.mxu0 0.0
        %1947 = vmatpush2.xpose.msra.mxu0 0.0
        %1948 = vmatprep.subr.mxu0 0.0
        %1949 = vmatpush2.xpose.msra.mxu0 0.0
        %1950 = vmatprep.subr.mxu0 0.0
        %1951 = vmatpush2.xpose.msra.mxu0 0.0
        %1952 = vmatprep.mubr.f32.mxu0 0.0
        %1953 = vmatmul.mubr.f32.gmra.mxu0 %v1874
        %v1954 = vpop.f32.mrf.mxu0
        %v1955 = vadd.f32 0.0, %v1954
        %v1956 = vpop.f32.mrf.mxu0
        %1957 = vdwg.mxu0
        %v1958 = vsel %vm1504, %v1427, 0
        %v1961 = vsel %vm1504, %v1451, 0
        %v1964 = vsel %vm1504, %v1452, 0
        %v1967 = vsel %vm1504, %v1453, 0
        %v1970 = vsel %vm1504, %v1454, 0
        %1972 = vmatprep.subr.mxu0 0.0
        %1973 = vmatpush1.xpose.msra.mxu0 0.0
        %1974 = vmatprep.subr.mxu0 0.0
        %1975 = vmatpush1.xpose.msra.mxu0 0.0
        %1976 = vmatprep.subr.mxu0 0.0
        %1977 = vmatpush1.xpose.msra.mxu0 0.0
        %1978 = vmatprep.subr.mxu0 0.0
        %1979 = vmatpush1.xpose.msra.mxu0 0.0
        %1980 = vmatprep.subr.mxu0 0.0
        %1981 = vmatpush1.xpose.msra.mxu0 0.0
        %1982 = vmatprep.subr.mxu0 0.0
        %1983 = vmatpush1.xpose.msra.mxu0 0.0
        %1984 = vmatprep.subr.mxu0 0.0
        %1985 = vmatpush1.xpose.msra.mxu0 0.0
        %1986 = vmatprep.subr.mxu0 0.0
        %1987 = vmatpush1.xpose.msra.mxu0 0.0
        %1988 = vmatprep.subr.mxu0 0.0
        %1989 = vmatpush1.xpose.msra.mxu0 0.0
        %1990 = vmatprep.subr.mxu0 0.0
        %1991 = vmatpush1.xpose.msra.mxu0 0.0
        %1992 = vmatprep.subr.mxu0 0.0
        %1993 = vmatpush1.xpose.msra.mxu0 0.0
        %1994 = vmatprep.subr.mxu0 0.0
        %1995 = vmatpush1.xpose.msra.mxu0 0.0
        %1996 = vmatprep.subr.mxu0 0.0
        %1997 = vmatpush1.xpose.msra.mxu0 %v1970
        %1998 = vmatprep.subr.mxu0 0.0
        %1999 = vmatpush1.xpose.msra.mxu0 %v1967
        %2000 = vmatprep.subr.mxu0 0.0
        %2001 = vmatpush1.xpose.msra.mxu0 %v1964
        %2002 = vmatprep.subr.mxu0 0.0
        %2003 = vmatpush1.xpose.msra.mxu0 %v1961
        %2004 = vmatprep.subr.mxu0 0.0
        %2005 = vmatpush2.xpose.msra.mxu0 0.0
        %2006 = vmatprep.subr.mxu0 0.0
        %2007 = vmatpush2.xpose.msra.mxu0 0.0
        %2008 = vmatprep.subr.mxu0 0.0
        %2009 = vmatpush2.xpose.msra.mxu0 0.0
        %2010 = vmatprep.subr.mxu0 0.0
        %2011 = vmatpush2.xpose.msra.mxu0 0.0
        %2012 = vmatprep.subr.mxu0 0.0
        %2013 = vmatpush2.xpose.msra.mxu0 0.0
        %2014 = vmatprep.subr.mxu0 0.0
        %2015 = vmatpush2.xpose.msra.mxu0 0.0
        %2016 = vmatprep.subr.mxu0 0.0
        %2017 = vmatpush2.xpose.msra.mxu0 0.0
        %2018 = vmatprep.subr.mxu0 0.0
        %2019 = vmatpush2.xpose.msra.mxu0 0.0
        %2020 = vmatprep.subr.mxu0 0.0
        %2021 = vmatpush2.xpose.msra.mxu0 0.0
        %2022 = vmatprep.subr.mxu0 0.0
        %2023 = vmatpush2.xpose.msra.mxu0 0.0
        %2024 = vmatprep.subr.mxu0 0.0
        %2025 = vmatpush2.xpose.msra.mxu0 0.0
        %2026 = vmatprep.subr.mxu0 0.0
        %2027 = vmatpush2.xpose.msra.mxu0 0.0
        %2028 = vmatprep.subr.mxu0 0.0
        %2029 = vmatpush2.xpose.msra.mxu0 0.0
        %2030 = vmatprep.subr.mxu0 0.0
        %2031 = vmatpush2.xpose.msra.mxu0 0.0
        %2032 = vmatprep.subr.mxu0 0.0
        %2033 = vmatpush2.xpose.msra.mxu0 0.0
        %2034 = vmatprep.subr.mxu0 0.0
        %2035 = vmatpush2.xpose.msra.mxu0 0.0
        %2036 = vmatprep.mubr.f32.mxu0 0.0
        %2037 = vmatmul.mubr.f32.gmra.mxu0 %v1958
        %v2038 = vpop.f32.mrf.mxu0
        %v2039 = vadd.f32 0.0, %v2038
        %v2040 = vpop.f32.mrf.mxu0
        %2041 = vdwg.mxu0
        %v2042 = vsel %vm1504, %v1428, 0
        %v2045 = vsel %vm1504, %v1455, 0
        %v2048 = vsel %vm1504, %v1456, 0
        %v2051 = vsel %vm1504, %v1457, 0
        %v2054 = vsel %vm1504, %v1458, 0
        %2056 = vmatprep.subr.mxu0 0.0
        %2057 = vmatpush1.xpose.msra.mxu0 0.0
        %2058 = vmatprep.subr.mxu0 0.0
        %2059 = vmatpush1.xpose.msra.mxu0 0.0
        %2060 = vmatprep.subr.mxu0 0.0
        %2061 = vmatpush1.xpose.msra.mxu0 0.0
        %2062 = vmatprep.subr.mxu0 0.0
        %2063 = vmatpush1.xpose.msra.mxu0 0.0
        %2064 = vmatprep.subr.mxu0 0.0
        %2065 = vmatpush1.xpose.msra.mxu0 0.0
        %2066 = vmatprep.subr.mxu0 0.0
        %2067 = vmatpush1.xpose.msra.mxu0 0.0
        %2068 = vmatprep.subr.mxu0 0.0
        %2069 = vmatpush1.xpose.msra.mxu0 0.0
        %2070 = vmatprep.subr.mxu0 0.0
        %2071 = vmatpush1.xpose.msra.mxu0 0.0
        %2072 = vmatprep.subr.mxu0 0.0
        %2073 = vmatpush1.xpose.msra.mxu0 0.0
        %2074 = vmatprep.subr.mxu0 0.0
        %2075 = vmatpush1.xpose.msra.mxu0 0.0
        %2076 = vmatprep.subr.mxu0 0.0
        %2077 = vmatpush1.xpose.msra.mxu0 0.0
        %2078 = vmatprep.subr.mxu0 0.0
        %2079 = vmatpush1.xpose.msra.mxu0 0.0
        %2080 = vmatprep.subr.mxu0 0.0
        %2081 = vmatpush1.xpose.msra.mxu0 %v2054
        %2082 = vmatprep.subr.mxu0 0.0
        %2083 = vmatpush1.xpose.msra.mxu0 %v2051
        %2084 = vmatprep.subr.mxu0 0.0
        %2085 = vmatpush1.xpose.msra.mxu0 %v2048
        %2086 = vmatprep.subr.mxu0 0.0
        %2087 = vmatpush1.xpose.msra.mxu0 %v2045
        %2088 = vmatprep.subr.mxu0 0.0
        %2089 = vmatpush2.xpose.msra.mxu0 0.0
        %2090 = vmatprep.subr.mxu0 0.0
        %2091 = vmatpush2.xpose.msra.mxu0 0.0
        %2092 = vmatprep.subr.mxu0 0.0
        %2093 = vmatpush2.xpose.msra.mxu0 0.0
        %2094 = vmatprep.subr.mxu0 0.0
        %2095 = vmatpush2.xpose.msra.mxu0 0.0
        %2096 = vmatprep.subr.mxu0 0.0
        %2097 = vmatpush2.xpose.msra.mxu0 0.0
        %2098 = vmatprep.subr.mxu0 0.0
        %2099 = vmatpush2.xpose.msra.mxu0 0.0
        %2100 = vmatprep.subr.mxu0 0.0
        %2101 = vmatpush2.xpose.msra.mxu0 0.0
        %2102 = vmatprep.subr.mxu0 0.0
        %2103 = vmatpush2.xpose.msra.mxu0 0.0
        %2104 = vmatprep.subr.mxu0 0.0
        %2105 = vmatpush2.xpose.msra.mxu0 0.0
        %2106 = vmatprep.subr.mxu0 0.0
        %2107 = vmatpush2.xpose.msra.mxu0 0.0
        %2108 = vmatprep.subr.mxu0 0.0
        %2109 = vmatpush2.xpose.msra.mxu0 0.0
        %2110 = vmatprep.subr.mxu0 0.0
        %2111 = vmatpush2.xpose.msra.mxu0 0.0
        %2112 = vmatprep.subr.mxu0 0.0
        %2113 = vmatpush2.xpose.msra.mxu0 0.0
        %2114 = vmatprep.subr.mxu0 0.0
        %2115 = vmatpush2.xpose.msra.mxu0 0.0
        %2116 = vmatprep.subr.mxu0 0.0
        %2117 = vmatpush2.xpose.msra.mxu0 0.0
        %2118 = vmatprep.subr.mxu0 0.0
        %2119 = vmatpush2.xpose.msra.mxu0 0.0
        %2120 = vmatprep.mubr.f32.mxu0 0.0
        %2121 = vmatmul.mubr.f32.gmra.mxu0 %v2042
        %v2122 = vpop.f32.mrf.mxu0
        %v2123 = vadd.f32 0.0, %v2122
        %v2124 = vpop.f32.mrf.mxu0
        %2125 = vdwg.mxu0
        %v2126 = vsel %vm1504, %v1429, 0
        %v2129 = vsel %vm1504, %v1459, 0
        %v2132 = vsel %vm1504, %v1460, 0
        %v2135 = vsel %vm1504, %v1461, 0
        %v2138 = vsel %vm1504, %v1462, 0
        %2140 = vmatprep.subr.mxu0 0.0
        %2141 = vmatpush1.xpose.msra.mxu0 0.0
        %2142 = vmatprep.subr.mxu0 0.0
        %2143 = vmatpush1.xpose.msra.mxu0 0.0
        %2144 = vmatprep.subr.mxu0 0.0
        %2145 = vmatpush1.xpose.msra.mxu0 0.0
        %2146 = vmatprep.subr.mxu0 0.0
        %2147 = vmatpush1.xpose.msra.mxu0 0.0
        %2148 = vmatprep.subr.mxu0 0.0
        %2149 = vmatpush1.xpose.msra.mxu0 0.0
        %2150 = vmatprep.subr.mxu0 0.0
        %2151 = vmatpush1.xpose.msra.mxu0 0.0
        %2152 = vmatprep.subr.mxu0 0.0
        %2153 = vmatpush1.xpose.msra.mxu0 0.0
        %2154 = vmatprep.subr.mxu0 0.0
        %2155 = vmatpush1.xpose.msra.mxu0 0.0
        %2156 = vmatprep.subr.mxu0 0.0
        %2157 = vmatpush1.xpose.msra.mxu0 0.0
        %2158 = vmatprep.subr.mxu0 0.0
        %2159 = vmatpush1.xpose.msra.mxu0 0.0
        %2160 = vmatprep.subr.mxu0 0.0
        %2161 = vmatpush1.xpose.msra.mxu0 0.0
        %2162 = vmatprep.subr.mxu0 0.0
        %2163 = vmatpush1.xpose.msra.mxu0 0.0
        %2164 = vmatprep.subr.mxu0 0.0
        %2165 = vmatpush1.xpose.msra.mxu0 %v2138
        %2166 = vmatprep.subr.mxu0 0.0
        %2167 = vmatpush1.xpose.msra.mxu0 %v2135
        %2168 = vmatprep.subr.mxu0 0.0
        %2169 = vmatpush1.xpose.msra.mxu0 %v2132
        %2170 = vmatprep.subr.mxu0 0.0
        %2171 = vmatpush1.xpose.msra.mxu0 %v2129
        %2172 = vmatprep.subr.mxu0 0.0
        %2173 = vmatpush2.xpose.msra.mxu0 0.0
        %2174 = vmatprep.subr.mxu0 0.0
        %2175 = vmatpush2.xpose.msra.mxu0 0.0
        %2176 = vmatprep.subr.mxu0 0.0
        %2177 = vmatpush2.xpose.msra.mxu0 0.0
        %2178 = vmatprep.subr.mxu0 0.0
        %2179 = vmatpush2.xpose.msra.mxu0 0.0
        %2180 = vmatprep.subr.mxu0 0.0
        %2181 = vmatpush2.xpose.msra.mxu0 0.0
        %2182 = vmatprep.subr.mxu0 0.0
        %2183 = vmatpush2.xpose.msra.mxu0 0.0
        %2184 = vmatprep.subr.mxu0 0.0
        %2185 = vmatpush2.xpose.msra.mxu0 0.0
        %2186 = vmatprep.subr.mxu0 0.0
        %2187 = vmatpush2.xpose.msra.mxu0 0.0
        %2188 = vmatprep.subr.mxu0 0.0
        %2189 = vmatpush2.xpose.msra.mxu0 0.0
        %2190 = vmatprep.subr.mxu0 0.0
        %2191 = vmatpush2.xpose.msra.mxu0 0.0
        %2192 = vmatprep.subr.mxu0 0.0
        %2193 = vmatpush2.xpose.msra.mxu0 0.0
        %2194 = vmatprep.subr.mxu0 0.0
        %2195 = vmatpush2.xpose.msra.mxu0 0.0
        %2196 = vmatprep.subr.mxu0 0.0
        %2197 = vmatpush2.xpose.msra.mxu0 0.0
        %2198 = vmatprep.subr.mxu0 0.0
        %2199 = vmatpush2.xpose.msra.mxu0 0.0
        %2200 = vmatprep.subr.mxu0 0.0
        %2201 = vmatpush2.xpose.msra.mxu0 0.0
        %2202 = vmatprep.subr.mxu0 0.0
        %2203 = vmatpush2.xpose.msra.mxu0 0.0
        %2204 = vmatprep.mubr.f32.mxu0 0.0
        %2205 = vmatmul.mubr.f32.gmra.mxu0 %v2126
        %v2206 = vpop.f32.mrf.mxu0
        %v2207 = vadd.f32 0.0, %v2206
        %v2208 = vpop.f32.mrf.mxu0
        %2209 = vdwg.mxu0
        %v2210 = vsel %vm1504, %v1430, 0
        %v2213 = vsel %vm1504, %v1463, 0
        %v2216 = vsel %vm1504, %v1464, 0
        %v2219 = vsel %vm1504, %v1465, 0
        %v2222 = vsel %vm1504, %v1466, 0
        %2224 = vmatprep.subr.mxu0 0.0
        %2225 = vmatpush1.xpose.msra.mxu0 0.0
        %2226 = vmatprep.subr.mxu0 0.0
        %2227 = vmatpush1.xpose.msra.mxu0 0.0
        %2228 = vmatprep.subr.mxu0 0.0
        %2229 = vmatpush1.xpose.msra.mxu0 0.0
        %2230 = vmatprep.subr.mxu0 0.0
        %2231 = vmatpush1.xpose.msra.mxu0 0.0
        %2232 = vmatprep.subr.mxu0 0.0
        %2233 = vmatpush1.xpose.msra.mxu0 0.0
        %2234 = vmatprep.subr.mxu0 0.0
        %2235 = vmatpush1.xpose.msra.mxu0 0.0
        %2236 = vmatprep.subr.mxu0 0.0
        %2237 = vmatpush1.xpose.msra.mxu0 0.0
        %2238 = vmatprep.subr.mxu0 0.0
        %2239 = vmatpush1.xpose.msra.mxu0 0.0
        %2240 = vmatprep.subr.mxu0 0.0
        %2241 = vmatpush1.xpose.msra.mxu0 0.0
        %2242 = vmatprep.subr.mxu0 0.0
        %2243 = vmatpush1.xpose.msra.mxu0 0.0
        %2244 = vmatprep.subr.mxu0 0.0
        %2245 = vmatpush1.xpose.msra.mxu0 0.0
        %2246 = vmatprep.subr.mxu0 0.0
        %2247 = vmatpush1.xpose.msra.mxu0 0.0
        %2248 = vmatprep.subr.mxu0 0.0
        %2249 = vmatpush1.xpose.msra.mxu0 %v2222
        %2250 = vmatprep.subr.mxu0 0.0
        %2251 = vmatpush1.xpose.msra.mxu0 %v2219
        %2252 = vmatprep.subr.mxu0 0.0
        %2253 = vmatpush1.xpose.msra.mxu0 %v2216
        %2254 = vmatprep.subr.mxu0 0.0
        %2255 = vmatpush1.xpose.msra.mxu0 %v2213
        %2256 = vmatprep.subr.mxu0 0.0
        %2257 = vmatpush2.xpose.msra.mxu0 0.0
        %2258 = vmatprep.subr.mxu0 0.0
        %2259 = vmatpush2.xpose.msra.mxu0 0.0
        %2260 = vmatprep.subr.mxu0 0.0
        %2261 = vmatpush2.xpose.msra.mxu0 0.0
        %2262 = vmatprep.subr.mxu0 0.0
        %2263 = vmatpush2.xpose.msra.mxu0 0.0
        %2264 = vmatprep.subr.mxu0 0.0
        %2265 = vmatpush2.xpose.msra.mxu0 0.0
        %2266 = vmatprep.subr.mxu0 0.0
        %2267 = vmatpush2.xpose.msra.mxu0 0.0
        %2268 = vmatprep.subr.mxu0 0.0
        %2269 = vmatpush2.xpose.msra.mxu0 0.0
        %2270 = vmatprep.subr.mxu0 0.0
        %2271 = vmatpush2.xpose.msra.mxu0 0.0
        %2272 = vmatprep.subr.mxu0 0.0
        %2273 = vmatpush2.xpose.msra.mxu0 0.0
        %2274 = vmatprep.subr.mxu0 0.0
        %2275 = vmatpush2.xpose.msra.mxu0 0.0
        %2276 = vmatprep.subr.mxu0 0.0
        %2277 = vmatpush2.xpose.msra.mxu0 0.0
        %2278 = vmatprep.subr.mxu0 0.0
        %2279 = vmatpush2.xpose.msra.mxu0 0.0
        %2280 = vmatprep.subr.mxu0 0.0
        %2281 = vmatpush2.xpose.msra.mxu0 0.0
        %2282 = vmatprep.subr.mxu0 0.0
        %2283 = vmatpush2.xpose.msra.mxu0 0.0
        %2284 = vmatprep.subr.mxu0 0.0
        %2285 = vmatpush2.xpose.msra.mxu0 0.0
        %2286 = vmatprep.subr.mxu0 0.0
        %2287 = vmatpush2.xpose.msra.mxu0 0.0
        %2288 = vmatprep.mubr.f32.mxu0 0.0
        %2289 = vmatmul.mubr.f32.gmra.mxu0 %v2210
        %v2290 = vpop.f32.mrf.mxu0
        %v2291 = vadd.f32 0.0, %v2290
        %v2292 = vpop.f32.mrf.mxu0
        %2293 = vdwg.mxu0
        %v2294 = vmul.f32 %v1703, 0.1
        %v2295 = vmul.f32 %v1787, 0.1
        %v2296 = vmul.f32 %v1871, 0.1
        %v2297 = vmul.f32 %v1955, 0.1
        %v2298 = vmul.f32 %v2039, 0.1
        %v2299 = vmul.f32 %v2123, 0.1
        %v2300 = vmul.f32 %v2207, 0.1
        %v2301 = vmul.f32 %v2291, 0.1
        %v2302 = vadd.f32 %v1592, %v2294
        %v2303 = vadd.f32 %v1614, %v2295
        %v2304 = vadd.f32 %v1597, %v2296
        %v2305 = vadd.f32 %v1615, %v2297
        %v2306 = vadd.f32 %v1602, %v2298
        %v2307 = vadd.f32 %v1616, %v2299
        %v2308 = vadd.f32 %v1607, %v2300
        %v2309 = vadd.f32 %v1617, %v2301
        %v2318 = vlaneseq
        %v2319 = vshrl.u32 %v2318, 7
        %v2320 = vsub.s32 0, %v2319
        %v2321 = vrot.slane %v1484, %v2320
        %v2322 = vlaneseq
        %v2323 = vshrl.u32 %v2322, 7
        %v2324 = vsub.s32 0, %v2323
        %v2325 = vrot.slane %v1485, %v2324
        %v2326 = vlaneseq
        %v2327 = vshrl.u32 %v2326, 7
        %v2328 = vsub.s32 0, %v2327
        %v2329 = vrot.slane %v1486, %v2328
        %v2330 = vlaneseq
        %v2331 = vshrl.u32 %v2330, 7
        %v2332 = vsub.s32 0, %v2331
        %v2333 = vrot.slane %v1487, %v2332
        %v2334 = vlaneseq
        %v2335 = vshrl.u32 %v2334, 7
        %v2336 = vsub.s32 0, %v2335
        %v2337 = vrot.slane %v1488, %v2336
        %v2338 = vlaneseq
        %v2339 = vshrl.u32 %v2338, 7
        %v2340 = vsub.s32 0, %v2339
        %v2341 = vrot.slane %v1489, %v2340
        %v2342 = vlaneseq
        %v2343 = vshrl.u32 %v2342, 7
        %v2344 = vsub.s32 0, %v2343
        %v2345 = vrot.slane %v1490, %v2344
        %v2346 = vlaneseq
        %v2347 = vshrl.u32 %v2346, 7
        %v2348 = vsub.s32 0, %v2347
        %v2349 = vrot.slane %v1491, %v2348
        %v2358 = vadd.f32 %v2302, %v2321
        %v2359 = vadd.f32 %v2303, %v2325
        %v2360 = vadd.f32 %v2304, %v2329
        %v2361 = vadd.f32 %v2305, %v2333
        %v2362 = vadd.f32 %v2306, %v2337
        %v2363 = vadd.f32 %v2307, %v2341
        %v2364 = vadd.f32 %v2308, %v2345
        %v2365 = vadd.f32 %v2309, %v2349
        %v2366 = vmax.f32 %v2358, 0.0
        %v2367 = vmax.f32 %v2359, 0.0
        %v2368 = vmax.f32 %v2360, 0.0
        %v2369 = vmax.f32 %v2361, 0.0
        %v2370 = vmax.f32 %v2362, 0.0
        %v2371 = vmax.f32 %v2363, 0.0
        %v2372 = vmax.f32 %v2364, 0.0
        %v2373 = vmax.f32 %v2365, 0.0
        %v2374 = vld [vmem:[%s9] sm:$0x1]
        %v2375 = vld [vmem:[%s540] sm:$0x1]
        %v2376 = vld [vmem:[%s540 + $0x1] sm:$0x1]
        %v2377 = vld [vmem:[%s540 + $0x2] sm:$0x1]
        %v2378 = vld [vmem:[%s540 + $0x3] sm:$0x1]
        %v2379 = vld [vmem:[%s540 + $0x4] sm:$0x1]
        %v2380 = vld [vmem:[%s540 + $0x5] sm:$0x1]
        %v2381 = vld [vmem:[%s540 + $0x6] sm:$0x1]
        %v2382 = vld [vmem:[%s540 + $0x7] sm:$0x1]
        %v2383 = vld [vmem:[#allocation2] sm:$0x1]
        %v2384 = vld [vmem:[%s545] sm:$0x1]
        %v2385 = vld [vmem:[%s545 + $0x1] sm:$0x1]
        %v2386 = vld [vmem:[%s545 + $0x2] sm:$0x1]
        %v2387 = vld [vmem:[%s545 + $0x3] sm:$0x1]
        %v2388 = vld [vmem:[%s545 + $0x4] sm:$0x1]
        %v2389 = vld [vmem:[%s545 + $0x5] sm:$0x1]
        %v2390 = vld [vmem:[%s545 + $0x6] sm:$0x1]
        %v2391 = vld [vmem:[%s545 + $0x7] sm:$0x1]
        %v2392 = vmul.f32 %v2384, 0.1
        %v2393 = vmul.f32 %v2385, 0.1
        %v2394 = vmul.f32 %v2386, 0.1
        %v2395 = vmul.f32 %v2387, 0.1
        %v2396 = vmul.f32 %v2388, 0.1
        %v2397 = vmul.f32 %v2389, 0.1
        %v2398 = vmul.f32 %v2390, 0.1
        %v2399 = vmul.f32 %v2391, 0.1
        %v2400 = vadd.f32 %v2383, %v2392
        %v2401 = vadd.f32 %v2383, %v2393
        %v2402 = vadd.f32 %v2383, %v2394
        %v2403 = vadd.f32 %v2383, %v2395
        %v2404 = vadd.f32 %v2383, %v2396
        %v2405 = vadd.f32 %v2383, %v2397
        %v2406 = vadd.f32 %v2383, %v2398
        %v2407 = vadd.f32 %v2383, %v2399
        %v2408 = vmul.f32 %v2375, 0.1
        %v2409 = vmul.f32 %v2376, 0.1
        %v2410 = vmul.f32 %v2377, 0.1
        %v2411 = vmul.f32 %v2378, 0.1
        %v2412 = vmul.f32 %v2379, 0.1
        %v2413 = vmul.f32 %v2380, 0.1
        %v2414 = vmul.f32 %v2381, 0.1
        %v2415 = vmul.f32 %v2382, 0.1
        %v2417 = vlaneseq
        %v2418 = vshrl.u32 %v2417, 7
        %v2419 = vsub.s32 0, %v2418
        %v2420 = vrot.slane %v2374, %v2419
        %v2430 = vcombine.low %v2408, %v2409
        %v2431 = vcombine.low %v2410, %v2411
        %v2432 = vcombine.low %v2412, %v2413
        %v2433 = vcombine.low %v2414, %v2415
        %v2435 = vunpack.c.l.s4 1966171168
        %v2436 = vunpack.c.0.s8 %v2435
        %v2437 = vlaneseq
        %v2438 = vshrl.u32 %v2437, 7
        %v2439 = vsub.s32 %v2436, %v2438
        %v2440 = vrot.slane %v2430, %v2439
        %v2442 = vunpack.c.l.s4 1966171168
        %v2443 = vunpack.c.0.s8 %v2442
        %v2444 = vlaneseq
        %v2445 = vshrl.u32 %v2444, 7
        %v2446 = vsub.s32 %v2443, %v2445
        %v2447 = vrot.slane %v2431, %v2446
        %v2449 = vunpack.c.l.s4 1966171168
        %v2450 = vunpack.c.0.s8 %v2449
        %v2451 = vlaneseq
        %v2452 = vshrl.u32 %v2451, 7
        %v2453 = vsub.s32 %v2450, %v2452
        %v2454 = vrot.slane %v2432, %v2453
        %v2456 = vunpack.c.l.s4 1966171168
        %v2457 = vunpack.c.0.s8 %v2456
        %v2458 = vlaneseq
        %v2459 = vshrl.u32 %v2458, 7
        %v2460 = vsub.s32 %v2457, %v2459
        %v2461 = vrot.slane %v2433, %v2460
        %v2462 = vcombine.low %v2440, %v2447
        %v2463 = vcombine.low %v2454, %v2461
        %v2465 = vunpack.c.l.s4 1966171168
        %v2466 = vunpack.c.0.s8 %v2465
        %v2467 = vlaneseq
        %v2468 = vshrl.u32 %v2467, 7
        %v2469 = vsub.s32 %v2466, %v2468
        %v2470 = vrot.slane %v2462, %v2469
        %v2472 = vunpack.c.l.s4 1966171168
        %v2473 = vunpack.c.0.s8 %v2472
        %v2474 = vlaneseq
        %v2475 = vshrl.u32 %v2474, 7
        %v2476 = vsub.s32 %v2473, %v2475
        %v2477 = vrot.slane %v2463, %v2476
        %v2478 = vcombine.low %v2470, %v2477
        %v2480 = vadd.f32 %v2420, %v2478
        %v2482 = vcombine.high %v2480, %v2480
        %v2484 = vunpack.c.l.s4 1966171168
        %v2485 = vunpack.c.0.s8 %v2484
        %v2486 = vlaneseq
        %v2487 = vshrl.u32 %v2486, 7
        %v2488 = vsub.s32 %v2485, %v2487
        %v2489 = vrot.slane %v2480, %v2488
        %v2491 = vunpack.c.l.s4 1966171168
        %v2492 = vunpack.c.0.s8 %v2491
        %v2493 = vlaneseq
        %v2494 = vshrl.u32 %v2493, 7
        %v2495 = vsub.s32 %v2492, %v2494
        %v2496 = vrot.slane %v2482, %v2495
        %v2497 = vcombine.high %v2489, %v2489
        %v2498 = vcombine.high %v2496, %v2496
        %v2500 = vunpack.c.l.s4 1966171168
        %v2501 = vunpack.c.0.s8 %v2500
        %v2502 = vlaneseq
        %v2503 = vshrl.u32 %v2502, 7
        %v2504 = vsub.s32 %v2501, %v2503
        %v2505 = vrot.slane %v2489, %v2504
        %v2507 = vunpack.c.l.s4 1966171168
        %v2508 = vunpack.c.0.s8 %v2507
        %v2509 = vlaneseq
        %v2510 = vshrl.u32 %v2509, 7
        %v2511 = vsub.s32 %v2508, %v2510
        %v2512 = vrot.slane %v2496, %v2511
        %v2514 = vunpack.c.l.s4 1966171168
        %v2515 = vunpack.c.0.s8 %v2514
        %v2516 = vlaneseq
        %v2517 = vshrl.u32 %v2516, 7
        %v2518 = vsub.s32 %v2515, %v2517
        %v2519 = vrot.slane %v2497, %v2518
        %v2521 = vunpack.c.l.s4 1966171168
        %v2522 = vunpack.c.0.s8 %v2521
        %v2523 = vlaneseq
        %v2524 = vshrl.u32 %v2523, 7
        %v2525 = vsub.s32 %v2522, %v2524
        %v2526 = vrot.slane %v2498, %v2525
        %v2527 = vcombine.high %v2505, %v2505
        %v2528 = vcombine.high %v2512, %v2512
        %v2529 = vcombine.high %v2519, %v2519
        %v2530 = vcombine.high %v2526, %v2526
        %v2531 = vlaneseq
        %v2532 = vshrl.u32 %v2531, 7
        %v2533 = vsub.s32 0, %v2532
        %v2534 = vrot.slane %v2505, %v2533
        %v2535 = vlaneseq
        %v2536 = vshrl.u32 %v2535, 7
        %v2537 = vsub.s32 0, %v2536
        %v2538 = vrot.slane %v2519, %v2537
        %v2539 = vlaneseq
        %v2540 = vshrl.u32 %v2539, 7
        %v2541 = vsub.s32 0, %v2540
        %v2542 = vrot.slane %v2527, %v2541
        %v2543 = vlaneseq
        %v2544 = vshrl.u32 %v2543, 7
        %v2545 = vsub.s32 0, %v2544
        %v2546 = vrot.slane %v2529, %v2545
        %v2547 = vlaneseq
        %v2548 = vshrl.u32 %v2547, 7
        %v2549 = vsub.s32 0, %v2548
        %v2550 = vrot.slane %v2512, %v2549
        %v2551 = vlaneseq
        %v2552 = vshrl.u32 %v2551, 7
        %v2553 = vsub.s32 0, %v2552
        %v2554 = vrot.slane %v2526, %v2553
        %v2555 = vlaneseq
        %v2556 = vshrl.u32 %v2555, 7
        %v2557 = vsub.s32 0, %v2556
        %v2558 = vrot.slane %v2528, %v2557
        %v2559 = vlaneseq
        %v2560 = vshrl.u32 %v2559, 7
        %v2561 = vsub.s32 0, %v2560
        %v2562 = vrot.slane %v2530, %v2561
        %v2571 = vmul.f32 %v2366, %v2534
        %v2572 = vmul.f32 %v2367, %v2538
        %v2573 = vmul.f32 %v2368, %v2542
        %v2574 = vmul.f32 %v2369, %v2546
        %v2575 = vmul.f32 %v2370, %v2550
        %v2576 = vmul.f32 %v2371, %v2554
        %v2577 = vmul.f32 %v2372, %v2558
        %v2578 = vmul.f32 %v2373, %v2562
        %vm2579 = vcmask 257024
        %v2580 = vsel %vm2579, %v2571, 0.0
        %2581 = vadd.xlane.f32.xlu0 %v2580
        %v2582 = vpop.xlane.xlu0 %2581
        %v2583 = vsel %vm2579, %v2572, 0.0
        %2584 = vadd.xlane.f32.xlu0 %v2583
        %v2585 = vpop.xlane.xlu0 %2584
        %v2586 = vsel %vm2579, %v2573, 0.0
        %2587 = vadd.xlane.f32.xlu0 %v2586
        %v2588 = vpop.xlane.xlu0 %2587
        %v2589 = vsel %vm2579, %v2574, 0.0
        %2590 = vadd.xlane.f32.xlu0 %v2589
        %v2591 = vpop.xlane.xlu0 %2590
        %v2592 = vsel %vm2579, %v2575, 0.0
        %2593 = vadd.xlane.f32.xlu0 %v2592
        %v2594 = vpop.xlane.xlu0 %2593
        %v2595 = vsel %vm2579, %v2576, 0.0
        %2596 = vadd.xlane.f32.xlu0 %v2595
        %v2597 = vpop.xlane.xlu0 %2596
        %v2598 = vsel %vm2579, %v2577, 0.0
        %2599 = vadd.xlane.f32.xlu0 %v2598
        %v2600 = vpop.xlane.xlu0 %2599
        %v2601 = vsel %vm2579, %v2578, 0.0
        %2602 = vadd.xlane.f32.xlu0 %v2601
        %v2603 = vpop.xlane.xlu0 %2602
        %2605 = vset.pattern.permute.xlu0 0
        %2606 = vperm.xlu0 %2605, %v2400
        %v2607 = vpop.permute.xlu0 %2606
        %v2609 = vlaneseq
        %v2610 = vshrl.u32 %v2609, 7
        %v2611 = vsub.s32 0, %v2610
        %v2612 = vrot.slane %v2607, %v2611
        %2614 = vset.pattern.permute.xlu0 0
        %2615 = vperm.xlu0 %2614, %v2401
        %v2616 = vpop.permute.xlu0 %2615
        %v2618 = vlaneseq
        %v2619 = vshrl.u32 %v2618, 7
        %v2620 = vsub.s32 0, %v2619
        %v2621 = vrot.slane %v2616, %v2620
        %2623 = vset.pattern.permute.xlu0 0
        %2624 = vperm.xlu0 %2623, %v2402
        %v2625 = vpop.permute.xlu0 %2624
        %v2627 = vlaneseq
        %v2628 = vshrl.u32 %v2627, 7
        %v2629 = vsub.s32 0, %v2628
        %v2630 = vrot.slane %v2625, %v2629
        %2632 = vset.pattern.permute.xlu0 0
        %2633 = vperm.xlu0 %2632, %v2403
        %v2634 = vpop.permute.xlu0 %2633
        %v2636 = vlaneseq
        %v2637 = vshrl.u32 %v2636, 7
        %v2638 = vsub.s32 0, %v2637
        %v2639 = vrot.slane %v2634, %v2638
        %2641 = vset.pattern.permute.xlu0 0
        %2642 = vperm.xlu0 %2641, %v2404
        %v2643 = vpop.permute.xlu0 %2642
        %v2645 = vlaneseq
        %v2646 = vshrl.u32 %v2645, 7
        %v2647 = vsub.s32 0, %v2646
        %v2648 = vrot.slane %v2643, %v2647
        %2650 = vset.pattern.permute.xlu0 0
        %2651 = vperm.xlu0 %2650, %v2405
        %v2652 = vpop.permute.xlu0 %2651
        %v2654 = vlaneseq
        %v2655 = vshrl.u32 %v2654, 7
        %v2656 = vsub.s32 0, %v2655
        %v2657 = vrot.slane %v2652, %v2656
        %2659 = vset.pattern.permute.xlu0 0
        %2660 = vperm.xlu0 %2659, %v2406
        %v2661 = vpop.permute.xlu0 %2660
        %v2663 = vlaneseq
        %v2664 = vshrl.u32 %v2663, 7
        %v2665 = vsub.s32 0, %v2664
        %v2666 = vrot.slane %v2661, %v2665
        %2668 = vset.pattern.permute.xlu0 0
        %2669 = vperm.xlu0 %2668, %v2407
        %v2670 = vpop.permute.xlu0 %2669
        %v2672 = vlaneseq
        %v2673 = vshrl.u32 %v2672, 7
        %v2674 = vsub.s32 0, %v2673
        %v2675 = vrot.slane %v2670, %v2674
        %v2684 = vcombine.low %v2612, %v2621
        %v2685 = vcombine.low %v2630, %v2639
        %v2686 = vcombine.low %v2648, %v2657
        %v2687 = vcombine.low %v2666, %v2675
        %v2689 = vunpack.c.l.s4 1966171168
        %v2690 = vunpack.c.0.s8 %v2689
        %v2691 = vlaneseq
        %v2692 = vshrl.u32 %v2691, 7
        %v2693 = vsub.s32 %v2690, %v2692
        %v2694 = vrot.slane %v2684, %v2693
        %v2696 = vunpack.c.l.s4 1966171168
        %v2697 = vunpack.c.0.s8 %v2696
        %v2698 = vlaneseq
        %v2699 = vshrl.u32 %v2698, 7
        %v2700 = vsub.s32 %v2697, %v2699
        %v2701 = vrot.slane %v2685, %v2700
        %v2703 = vunpack.c.l.s4 1966171168
        %v2704 = vunpack.c.0.s8 %v2703
        %v2705 = vlaneseq
        %v2706 = vshrl.u32 %v2705, 7
        %v2707 = vsub.s32 %v2704, %v2706
        %v2708 = vrot.slane %v2686, %v2707
        %v2710 = vunpack.c.l.s4 1966171168
        %v2711 = vunpack.c.0.s8 %v2710
        %v2712 = vlaneseq
        %v2713 = vshrl.u32 %v2712, 7
        %v2714 = vsub.s32 %v2711, %v2713
        %v2715 = vrot.slane %v2687, %v2714
        %v2716 = vcombine.low %v2694, %v2701
        %v2717 = vcombine.low %v2708, %v2715
        %v2719 = vunpack.c.l.s4 1966171168
        %v2720 = vunpack.c.0.s8 %v2719
        %v2721 = vlaneseq
        %v2722 = vshrl.u32 %v2721, 7
        %v2723 = vsub.s32 %v2720, %v2722
        %v2724 = vrot.slane %v2716, %v2723
        %v2726 = vunpack.c.l.s4 1966171168
        %v2727 = vunpack.c.0.s8 %v2726
        %v2728 = vlaneseq
        %v2729 = vshrl.u32 %v2728, 7
        %v2730 = vsub.s32 %v2727, %v2729
        %v2731 = vrot.slane %v2717, %v2730
        %v2732 = vcombine.low %v2724, %v2731
        %v2733 = vlaneseq
        %v2734 = vshrl.u32 %v2733, 7
        %v2735 = vsub.s32 0, %v2734
        %v2736 = vrot.slane %v2732, %v2735
        %2738 = vbcast.lane.b32.xlu0 %v2736, 256
        %v2739 = vpop.permute.xlu0 %2738
        %v2740 = vlaneseq
        %v2741 = vshrl.u32 %v2740, 7
        %v2742 = vsub.s32 1, %v2741
        %v2743 = vrot.slane %v2732, %v2742
        %2745 = vbcast.lane.b32.xlu0 %v2743, 256
        %v2746 = vpop.permute.xlu0 %2745
        %v2747 = vlaneseq
        %v2748 = vshrl.u32 %v2747, 7
        %v2749 = vsub.s32 2, %v2748
        %v2750 = vrot.slane %v2732, %v2749
        %2752 = vbcast.lane.b32.xlu0 %v2750, 256
        %v2753 = vpop.permute.xlu0 %2752
        %v2754 = vlaneseq
        %v2755 = vshrl.u32 %v2754, 7
        %v2756 = vsub.s32 3, %v2755
        %v2757 = vrot.slane %v2732, %v2756
        %2759 = vbcast.lane.b32.xlu0 %v2757, 256
        %v2760 = vpop.permute.xlu0 %2759
        %v2761 = vlaneseq
        %v2762 = vshrl.u32 %v2761, 7
        %v2763 = vsub.s32 4, %v2762
        %v2764 = vrot.slane %v2732, %v2763
        %2766 = vbcast.lane.b32.xlu0 %v2764, 256
        %v2767 = vpop.permute.xlu0 %2766
        %v2768 = vlaneseq
        %v2769 = vshrl.u32 %v2768, 7
        %v2770 = vsub.s32 5, %v2769
        %v2771 = vrot.slane %v2732, %v2770
        %2773 = vbcast.lane.b32.xlu0 %v2771, 256
        %v2774 = vpop.permute.xlu0 %2773
        %v2775 = vlaneseq
        %v2776 = vshrl.u32 %v2775, 7
        %v2777 = vsub.s32 6, %v2776
        %v2778 = vrot.slane %v2732, %v2777
        %2780 = vbcast.lane.b32.xlu0 %v2778, 256
        %v2781 = vpop.permute.xlu0 %2780
        %v2782 = vlaneseq
        %v2783 = vshrl.u32 %v2782, 7
        %v2784 = vsub.s32 7, %v2783
        %v2785 = vrot.slane %v2732, %v2784
        %2787 = vbcast.lane.b32.xlu0 %v2785, 256
        %v2788 = vpop.permute.xlu0 %2787
        %v2797 = vadd.f32 %v2582, %v2739
        %v2798 = vadd.f32 %v2585, %v2746
        %v2799 = vadd.f32 %v2588, %v2753
        %v2800 = vadd.f32 %v2591, %v2760
        %v2801 = vadd.f32 %v2594, %v2767
        %v2802 = vadd.f32 %v2597, %v2774
        %v2803 = vadd.f32 %v2600, %v2781
        %v2804 = vadd.f32 %v2603, %v2788
        %2813 = vset.pattern.permute.xlu0 0
        %2814 = vperm.xlu0 %2813, %v2797
        %v2815 = vpop.permute.xlu0 %2814
        %2816 = vset.pattern.permute.xlu0 0
        %2817 = vperm.xlu0 %2816, %v2798
        %v2818 = vpop.permute.xlu0 %2817
        %2819 = vset.pattern.permute.xlu0 0
        %2820 = vperm.xlu0 %2819, %v2799
        %v2821 = vpop.permute.xlu0 %2820
        %2822 = vset.pattern.permute.xlu0 0
        %2823 = vperm.xlu0 %2822, %v2800
        %v2824 = vpop.permute.xlu0 %2823
        %2825 = vset.pattern.permute.xlu0 0
        %2826 = vperm.xlu0 %2825, %v2801
        %v2827 = vpop.permute.xlu0 %2826
        %2828 = vset.pattern.permute.xlu0 0
        %2829 = vperm.xlu0 %2828, %v2802
        %v2830 = vpop.permute.xlu0 %2829
        %2831 = vset.pattern.permute.xlu0 0
        %2832 = vperm.xlu0 %2831, %v2803
        %v2833 = vpop.permute.xlu0 %2832
        %2834 = vset.pattern.permute.xlu0 0
        %2835 = vperm.xlu0 %2834, %v2804
        %v2836 = vpop.permute.xlu0 %2835
        %v2837 = vlaneseq
        %v2838 = vand.u32 %v2837, 127
        %v2839 = vlaneseq
        %v2840 = vshrl.u32 %v2839, 7
        %v2841 = vsub.s32 %v2838, %v2840
        %v2842 = vrot.slane %v2815, %v2841
        %v2843 = vlaneseq
        %v2844 = vshrl.u32 %v2843, 7
        %v2845 = vsub.s32 %v2838, %v2844
        %v2846 = vrot.slane %v2818, %v2845
        %v2847 = vlaneseq
        %v2848 = vshrl.u32 %v2847, 7
        %v2849 = vsub.s32 %v2838, %v2848
        %v2850 = vrot.slane %v2821, %v2849
        %v2851 = vlaneseq
        %v2852 = vshrl.u32 %v2851, 7
        %v2853 = vsub.s32 %v2838, %v2852
        %v2854 = vrot.slane %v2824, %v2853
        %v2855 = vlaneseq
        %v2856 = vshrl.u32 %v2855, 7
        %v2857 = vsub.s32 %v2838, %v2856
        %v2858 = vrot.slane %v2827, %v2857
        %v2859 = vlaneseq
        %v2860 = vshrl.u32 %v2859, 7
        %v2861 = vsub.s32 %v2838, %v2860
        %v2862 = vrot.slane %v2830, %v2861
        %v2863 = vlaneseq
        %v2864 = vshrl.u32 %v2863, 7
        %v2865 = vsub.s32 %v2838, %v2864
        %v2866 = vrot.slane %v2833, %v2865
        %v2867 = vlaneseq
        %v2868 = vshrl.u32 %v2867, 7
        %v2869 = vsub.s32 %v2838, %v2868
        %v2870 = vrot.slane %v2836, %v2869
        %vm2871 = vcmask 1041409
        %v2872 = vsel %vm2871, %v2846, %v2842
        %vm2873 = vcmask 1042434
        %v2874 = vsel %vm2873, %v2850, %v2872
        %vm2875 = vcmask 1043459
        %v2876 = vsel %vm2875, %v2854, %v2874
        %vm2877 = vcmask 1044484
        %v2878 = vsel %vm2877, %v2858, %v2876
        %vm2879 = vcmask 1045509
        %v2880 = vsel %vm2879, %v2862, %v2878
        %vm2881 = vcmask 1046534
        %v2882 = vsel %vm2881, %v2866, %v2880
        %vm2883 = vcmask 1047559
        %v2884 = vsel %vm2883, %v2870, %v2882
        %2886 = vxpose.xlu0.b32.start [1/16] %v2884, 128
        %2887 = vxpose.xlu0.b32.cont [2/16] 0.0, 128
        %2888 = vxpose.xlu0.b32.cont [3/16] 0.0, 128
        %2889 = vxpose.xlu0.b32.cont [4/16] 0.0, 128
        %2890 = vxpose.xlu0.b32.cont [5/16] 0.0, 128
        %2891 = vxpose.xlu0.b32.cont [6/16] 0.0, 128
        %2892 = vxpose.xlu0.b32.cont [7/16] 0.0, 128
        %2893 = vxpose.xlu0.b32.cont [8/16] 0.0, 128
        %2894 = vxpose.xlu0.b32.cont [9/16] 0.0, 128
        %2895 = vxpose.xlu0.b32.cont [10/16] 0.0, 128
        %2896 = vxpose.xlu0.b32.cont [11/16] 0.0, 128
        %2897 = vxpose.xlu0.b32.cont [12/16] 0.0, 128
        %2898 = vxpose.xlu0.b32.cont [13/16] 0.0, 128
        %2899 = vxpose.xlu0.b32.cont [14/16] 0.0, 128
        %2900 = vxpose.xlu0.b32.cont [15/16] 0.0, 128
        %2901 = vxpose.xlu0.b32.end [16/16] 0.0, 128
        %v2902 = vpop.trf.xlu0
        %v2903 = vpop.trf.xlu0
        %v2904 = vpop.trf.xlu0
        %v2905 = vpop.trf.xlu0
        %v2906 = vpop.trf.xlu0
        %v2907 = vpop.trf.xlu0
        %v2908 = vpop.trf.xlu0
        %v2909 = vpop.trf.xlu0
        %v2910 = vpop.trf.xlu0
        %v2911 = vpop.trf.xlu0
        %v2912 = vpop.trf.xlu0
        %v2913 = vpop.trf.xlu0
        %v2914 = vpop.trf.xlu0
        %v2915 = vpop.trf.xlu0
        %v2916 = vpop.trf.xlu0
        %v2917 = vpop.trf.xlu0
        %vm2918 = vcmask 60416
        %2919 = vst.msk [vmem:[%s512] sm:$0xf] %vm2918, %v2902
        %s2920 = sand.u32 %s340, 1
        %s2921 = scalar_lea.sflag [#allocation4], %s2920
        %s2922 = sand.u32 %s340, 1
        %s2923 = smul.addr %s2922, 4
        %s2924 = scalar_lea.vmem [#allocation3], %s2923
        // Predicated region
        $region73: #{tpu_custom_call.1} parent=71 // pred_check
          %p2925 = pneg %p350
        $region74: #{tpu_custom_call.1} parent=71 // pred_check_branch
          %2927 = sbr.rel (%p2925) target = $region76
        $region75: #{tpu_custom_call.1} parent=71 // pred_region
          %s2929 = ssub.s32 64, 64
          %2930 = vsyncadd %s2921, %s2929
          %s2931 = smul.addr %s29, 64
          %s2932 = scalar_lea.hbm %s13, %s2931
          %s2934 = sshll.u32 %s2924, 4
          %s2935 = int_to_ptr.vmem [resolvable:$true] %s2934
          %2937 = dma.vmem_to_hbm [thread:$0]  %s2935, 64, %s2932, %s2921
        $region76: #{tpu_custom_call.1} parent=71 // pred_fallthru
          _
      $region72: #{tpu_custom_call.1} parent=5 // pred_fallthru
        _
      %p2938 = scmp.le.s32.totalorder 2, %s24
      // Predicated region
      $region77: #{tpu_custom_call.1} parent=5 // pred_check
        %p2939 = pneg %p2938
      $region78: #{tpu_custom_call.1} parent=5 // pred_check_branch
        %2941 = sbr.rel (%p2939) target = $region80
      $region79: #{tpu_custom_call.1} parent=5 // pred_region
        %s2942 = ssub.s32 %s24, 2
        // Predicated region
        $region81: #{tpu_custom_call.1} parent=79 // pred_check
          %p2943 = pneg %p356
        $region82: #{tpu_custom_call.1} parent=79 // pred_check_branch
          %2945 = sbr.rel (%p2943) target = $region84
        $region83: #{tpu_custom_call.1} parent=79 // pred_region
          %s2946 = sand.u32 %s341, 1
          %s2947 = scalar_lea.sflag [#allocation4], %s2946
          %s2948 = sand.u32 %s341, 1
          %s2949 = smul.addr %s2948, 4
          %s2950 = scalar_lea.vmem [#allocation3], %s2949
          %2951 = dma.done %s2947, 64
        $region84: #{tpu_custom_call.1} parent=79 // pred_fallthru
          _
      $region80: #{tpu_custom_call.1} parent=5 // pred_fallthru
        _
    $region6: #{tpu_custom_call.1} parent=1 // loop_footer
      %s28 = sadd.s32 1, %s24
    $region7: #{tpu_custom_call.1} parent=1 // loop_footer_branch
      %23 = sbr.rel target = $region3
    $region8: #{tpu_custom_call.1} parent=1 // loop_exit
      _
    %2952 = vsyncpa [#allocation4], 1
    %s2953 = scalar_lea.sflag [#allocation4], 1
    %2954 = vsyncpa %s2953, 1

</llo_original>
